<compile_context>
chip_gen: v6e
topology: v6e:2x2x1
jax: 0.10.0
libtpu: 0.0.40
codegen_flags: <defaults>
</compile_context>

<pallas_src>
import jax
import jax.numpy as jnp
from jax.experimental import pallas as pl
from jax.experimental.pallas import tpu as pltpu

IN_DIM = 1400
H1, H2, H3 = 512, 128, 32
OUT_DIM = 2
OUT_PAD = 128        # lane-dense output store; wrapper slices back to 2 cols
MAX_TB = 1024        # max batch tile (rows); ~10 MiB VMEM at bf16 incl. buffers


def _round_up(n, m):
    return (n + m - 1) // m * m


def mlp_kernel(x_ref, w1_ref, b1_ref, w2_ref, b2_ref, w3_ref, b3_ref,
               w4_ref, b4_ref, o_ref):
    # x and weights are bf16 -> native bf16 MXU matmuls, f32 accumulation.
    x = x_ref[...]                                                    # (TB, 1400) bf16

    # Linear(1400 -> 512) + ReLU
    h = jnp.dot(x, w1_ref[...], preferred_element_type=jnp.float32) + b1_ref[...]
    h = jnp.maximum(h, 0.0)

    # Linear(512 -> 128) + ReLU
    h = jnp.dot(h.astype(jnp.bfloat16), w2_ref[...],
                preferred_element_type=jnp.float32) + b2_ref[...]
    h = jnp.maximum(h, 0.0)

    # Linear(128 -> 32) + ReLU
    h = jnp.dot(h.astype(jnp.bfloat16), w3_ref[...],
                preferred_element_type=jnp.float32) + b3_ref[...]
    h = jnp.maximum(h, 0.0)

    # Linear(32 -> 2), padded to 128 output lanes for a lane-dense store.
    logits = jnp.dot(h.astype(jnp.bfloat16), w4_ref[...],
                     preferred_element_type=jnp.float32) + b4_ref[...]
    o_ref[...] = logits.astype(o_ref.dtype)                           # bf16 store


@jax.jit
def mlp_forward(x, kparams):
    (w1, b1), (w2, b2), (w3, b3), (w4, b4) = kparams
    B = x.shape[0]

    # Batch tiling: rows per tile is a multiple of 16 (bf16 sublane packing).
    if B <= MAX_TB:
        TB = _round_up(max(B, 16), 16)
        n_tiles = 1
    else:
        n_tiles = -(-B // MAX_TB)
        TB = _round_up(-(-B // n_tiles), 16)
    B_pad = TB * n_tiles

    # bf16 input; only row-pad (no column padding pass), cast fused into pad.
    if B_pad == B:
        xp = x.astype(jnp.bfloat16)
    else:
        xp = jnp.zeros((B_pad, IN_DIM), jnp.bfloat16).at[:B].set(
            x.astype(jnp.bfloat16))

    def resident(shape):
        # Constant index_map: weights/biases stay VMEM-resident across tiles.
        return pl.BlockSpec(shape, lambda i: (0,) * len(shape))

    flops = 2 * B_pad * (IN_DIM * H1 + H1 * H2 + H2 * H3 + H3 * OUT_PAD)
    bytes_accessed = (
        B_pad * IN_DIM * 2                      # bf16 input
        + B_pad * OUT_PAD * 2                   # bf16 output
        + sum(int(w.size) * w.dtype.itemsize + int(b.size) * b.dtype.itemsize
              for (w, b) in kparams)
    )

    out = pl.pallas_call(
        mlp_kernel,
        out_shape=jax.ShapeDtypeStruct((B_pad, OUT_PAD), jnp.bfloat16),
        grid=(n_tiles,),
        in_specs=[
            pl.BlockSpec((TB, IN_DIM), lambda i: (i, 0)),   # x: tiled over batch
            resident((IN_DIM, H1)), resident((1, H1)),
            resident((H1, H2)), resident((1, H2)),
            resident((H2, H3)), resident((1, H3)),
            resident((H3, OUT_PAD)), resident((1, OUT_PAD)),
        ],
        out_specs=pl.BlockSpec((TB, OUT_PAD), lambda i: (i, 0)),
        compiler_params=pltpu.CompilerParams(
            dimension_semantics=("parallel",),
            vmem_limit_bytes=32 * 1024 * 1024),
        cost_estimate=pl.CostEstimate(
            flops=flops, transcendentals=0, bytes_accessed=bytes_accessed),
    )(xp, w1, b1, w2, b2, w3, b3, w4, b4)

    logits = out[:B, :OUT_DIM].astype(jnp.float32)
    # Softmax over dim 0 (batch), exactly matching nn.Softmax(dim=0); hoisted
    # out of the kernel so the batch axis can be tiled / megacore-sharded.
    return jax.nn.softmax(logits, axis=0)


def init_params(key):
    # PyTorch nn.Linear default init: U(-1/sqrt(fan_in), 1/sqrt(fan_in)) for
    # both weight and bias. Weights stored as [in, out] (pre-transposed), f32.
    dims = [(IN_DIM, H1), (H1, H2), (H2, H3), (H3, OUT_DIM)]
    params = []
    for (fan_in, fan_out) in dims:
        key, kw, kb = jax.random.split(key, 3)
        bound = 1.0 / jnp.sqrt(fan_in)
        w = jax.random.uniform(kw, (fan_in, fan_out), jnp.float32, -bound, bound)
        b = jax.random.uniform(kb, (1, fan_out), jnp.float32, -bound, bound)
        params.append((w, b))
    return params


def prepare_kernel_params(params):
    """Quantize / pad the logical f32 [in, out] params into kernel layout.

    - all weights bf16, all biases f32.
    - w4/b4: zero-pad output cols 2 -> 128 (lane-dense output store).
    - no K padding of w1 (full-extent K block handles 1400 directly).
    """
    (w1, b1), (w2, b2), (w3, b3), (w4, b4) = params
    w4p = jnp.zeros((H3, OUT_PAD), jnp.float32).at[:, :OUT_DIM].set(w4)
    b4p = jnp.zeros((1, OUT_PAD), jnp.float32).at[:, :OUT_DIM].set(b4)
    return [(w1.astype(jnp.bfloat16), b1),
            (w2.astype(jnp.bfloat16), b2),
            (w3.astype(jnp.bfloat16), b3),
            (w4p.astype(jnp.bfloat16), b4p)]


def mlp_reference(x, params):
    # Reference in the kernel's numerics: bf16 inputs/weights/activations into
    # each matmul, f32 accumulation + bias + ReLU, bf16 logits, f32 softmax(dim=0).
    h = x.astype(jnp.bfloat16)
    for i, (w, b) in enumerate(params):
        wq = w.astype(jnp.bfloat16)
        h = jnp.dot(h.astype(jnp.bfloat16), wq,
                    preferred_element_type=jnp.float32) + b
        if i < len(params) - 1:
            h = jnp.maximum(h, 0.0)
    logits = h.astype(jnp.bfloat16).astype(jnp.float32)
    return jax.nn.softmax(logits, axis=0)


if __name__ == "__main__":
    key = jax.random.PRNGKey(0)
    kx, kp = jax.random.split(key)

    B = 8
    x = jax.random.normal(kx, (B, IN_DIM), jnp.float32)
    params = init_params(kp)
    kparams = prepare_kernel_params(params)

    out = jax.block_until_ready(mlp_forward(x, kparams))
    ref = mlp_reference(x, params)

    assert out.shape == (B, OUT_DIM)
    max_err = float(jnp.max(jnp.abs(out - ref)))
    assert jnp.allclose(out, ref, atol=1e-2, rtol=1e-2), (
        "mismatch vs reference: max abs err = %g" % max_err)
    # Each column of softmax(dim=0) must sum to 1 over the batch.
    assert jnp.allclose(jnp.sum(out, axis=0), jnp.ones((OUT_DIM,)), atol=1e-5)

    print("KERNEL_OK")
</pallas_src>

<mosaic_0001>
module attributes {stable_mosaic.version = 11 : i64} {
  func.func @mlp_kernel(%arg0: i32, %arg1: memref<16x1400xbf16, #tpu.memory_space<vmem>>, %arg2: memref<1400x512xbf16, #tpu.memory_space<vmem>>, %arg3: memref<1x512xf32, #tpu.memory_space<vmem>>, %arg4: memref<512x128xbf16, #tpu.memory_space<vmem>>, %arg5: memref<1x128xf32, #tpu.memory_space<vmem>>, %arg6: memref<128x32xbf16, #tpu.memory_space<vmem>>, %arg7: memref<1x32xf32, #tpu.memory_space<vmem>>, %arg8: memref<32x128xbf16, #tpu.memory_space<vmem>>, %arg9: memref<1x128xf32, #tpu.memory_space<vmem>>, %arg10: memref<16x128xbf16, #tpu.memory_space<vmem>>) attributes {dimension_semantics = [#tpu.dimension_semantics<parallel>], iteration_bounds = array<i64: 1>, scalar_prefetch = 0 : i64, scratch_operands = 0 : i64, tpu.core_type = #tpu.core_type<tc>, window_params = [{transform_indices = @transform_0, window_bounds = array<i64: 16, 1400>}, {pipeline_mode = #tpu.pipeline_mode<synchronous>, transform_indices = @transform_1, window_bounds = array<i64: 1400, 512>}, {pipeline_mode = #tpu.pipeline_mode<synchronous>, transform_indices = @transform_2, window_bounds = array<i64: 1, 512>}, {pipeline_mode = #tpu.pipeline_mode<synchronous>, transform_indices = @transform_3, window_bounds = array<i64: 512, 128>}, {pipeline_mode = #tpu.pipeline_mode<synchronous>, transform_indices = @transform_4, window_bounds = array<i64: 1, 128>}, {pipeline_mode = #tpu.pipeline_mode<synchronous>, transform_indices = @transform_5, window_bounds = array<i64: 128, 32>}, {pipeline_mode = #tpu.pipeline_mode<synchronous>, transform_indices = @transform_6, window_bounds = array<i64: 1, 32>}, {pipeline_mode = #tpu.pipeline_mode<synchronous>, transform_indices = @transform_7, window_bounds = array<i64: 32, 128>}, {pipeline_mode = #tpu.pipeline_mode<synchronous>, transform_indices = @transform_8, window_bounds = array<i64: 1, 128>}, {transform_indices = @transform_9, window_bounds = array<i64: 16, 128>}]} {
    %c0 = arith.constant 0 : index
    %c0_0 = arith.constant 0 : index
    %0 = vector.load %arg1[%c0, %c0_0] : memref<16x1400xbf16, #tpu.memory_space<vmem>>, vector<16x1400xbf16>
    %c0_1 = arith.constant 0 : index
    %c0_2 = arith.constant 0 : index
    %1 = vector.load %arg2[%c0_1, %c0_2] : memref<1400x512xbf16, #tpu.memory_space<vmem>>, vector<1400x512xbf16>
    %cst = arith.constant dense<0.000000e+00> : vector<16x512xf32>
    %2 = tpu.matmul %0, %1, %cst {dimension_numbers = #tpu.dot_dimension_numbers<[1], [0], [0], [1], [0, 0, 1, 1], [], []>} : vector<16x1400xbf16>, vector<1400x512xbf16>, vector<16x512xf32> -> vector<16x512xf32>
    %c0_3 = arith.constant 0 : index
    %c0_4 = arith.constant 0 : index
    %3 = vector.load %arg3[%c0_3, %c0_4] : memref<1x512xf32, #tpu.memory_space<vmem>>, vector<1x512xf32>
    %4 = vector.broadcast %3 : vector<1x512xf32> to vector<16x512xf32>
    %5 = arith.addf %2, %4 : vector<16x512xf32>
    %cst_5 = arith.constant 0.000000e+00 : f32
    %6 = vector.broadcast %cst_5 : f32 to vector<16x512xf32>
    %7 = arith.maximumf %5, %6 : vector<16x512xf32>
    %8 = arith.truncf %7 : vector<16x512xf32> to vector<16x512xbf16>
    %c0_6 = arith.constant 0 : index
    %c0_7 = arith.constant 0 : index
    %9 = vector.load %arg4[%c0_6, %c0_7] : memref<512x128xbf16, #tpu.memory_space<vmem>>, vector<512x128xbf16>
    %cst_8 = arith.constant dense<0.000000e+00> : vector<16x128xf32>
    %10 = tpu.matmul %8, %9, %cst_8 {dimension_numbers = #tpu.dot_dimension_numbers<[1], [0], [0], [1], [0, 0, 1, 1], [], []>} : vector<16x512xbf16>, vector<512x128xbf16>, vector<16x128xf32> -> vector<16x128xf32>
    %c0_9 = arith.constant 0 : index
    %c0_10 = arith.constant 0 : index
    %11 = vector.load %arg5[%c0_9, %c0_10] : memref<1x128xf32, #tpu.memory_space<vmem>>, vector<1x128xf32>
    %12 = vector.broadcast %11 : vector<1x128xf32> to vector<16x128xf32>
    %13 = arith.addf %10, %12 : vector<16x128xf32>
    %cst_11 = arith.constant 0.000000e+00 : f32
    %14 = vector.broadcast %cst_11 : f32 to vector<16x128xf32>
    %15 = arith.maximumf %13, %14 : vector<16x128xf32>
    %16 = arith.truncf %15 : vector<16x128xf32> to vector<16x128xbf16>
    %c0_12 = arith.constant 0 : index
    %c0_13 = arith.constant 0 : index
    %17 = vector.load %arg6[%c0_12, %c0_13] : memref<128x32xbf16, #tpu.memory_space<vmem>>, vector<128x32xbf16>
    %cst_14 = arith.constant dense<0.000000e+00> : vector<16x32xf32>
    %18 = tpu.matmul %16, %17, %cst_14 {dimension_numbers = #tpu.dot_dimension_numbers<[1], [0], [0], [1], [0, 0, 1, 1], [], []>} : vector<16x128xbf16>, vector<128x32xbf16>, vector<16x32xf32> -> vector<16x32xf32>
    %c0_15 = arith.constant 0 : index
    %c0_16 = arith.constant 0 : index
    %19 = vector.load %arg7[%c0_15, %c0_16] : memref<1x32xf32, #tpu.memory_space<vmem>>, vector<1x32xf32>
    %20 = vector.broadcast %19 : vector<1x32xf32> to vector<16x32xf32>
    %21 = arith.addf %18, %20 : vector<16x32xf32>
    %cst_17 = arith.constant 0.000000e+00 : f32
    %22 = vector.broadcast %cst_17 : f32 to vector<16x32xf32>
    %23 = arith.maximumf %21, %22 : vector<16x32xf32>
    %24 = arith.truncf %23 : vector<16x32xf32> to vector<16x32xbf16>
    %c0_18 = arith.constant 0 : index
    %c0_19 = arith.constant 0 : index
    %25 = vector.load %arg8[%c0_18, %c0_19] : memref<32x128xbf16, #tpu.memory_space<vmem>>, vector<32x128xbf16>
    %cst_20 = arith.constant dense<0.000000e+00> : vector<16x128xf32>
    %26 = tpu.matmul %24, %25, %cst_20 {dimension_numbers = #tpu.dot_dimension_numbers<[1], [0], [0], [1], [0, 0, 1, 1], [], []>} : vector<16x32xbf16>, vector<32x128xbf16>, vector<16x128xf32> -> vector<16x128xf32>
    %c0_21 = arith.constant 0 : index
    %c0_22 = arith.constant 0 : index
    %27 = vector.load %arg9[%c0_21, %c0_22] : memref<1x128xf32, #tpu.memory_space<vmem>>, vector<1x128xf32>
    %28 = vector.broadcast %27 : vector<1x128xf32> to vector<16x128xf32>
    %29 = arith.addf %26, %28 : vector<16x128xf32>
    %30 = arith.truncf %29 : vector<16x128xf32> to vector<16x128xbf16>
    %c0_23 = arith.constant 0 : index
    %c0_24 = arith.constant 0 : index
    %31 = vector.load %arg10[%c0_23, %c0_24] : memref<16x128xbf16, #tpu.memory_space<vmem>>, vector<16x128xbf16>
    tpu.vector_store %arg10[%c0_23, %c0_24], %30 {strides = array<i32>} : memref<16x128xbf16, #tpu.memory_space<vmem>>, vector<16x128xbf16>,
    return
  }
  func.func @transform_0(%arg0: i32) -> (i32, i32) {
    %c0_i32 = arith.constant 0 : i32
    %c0_i32_0 = arith.constant 0 : i32
    return %arg0, %c0_i32 : i32, i32
  }
  func.func @transform_1(%arg0: i32) -> (i32, i32) {
    %c0_i32 = arith.constant 0 : i32
    %c0_i32_0 = arith.constant 0 : i32
    %c0_i32_1 = arith.constant 0 : i32
    return %c0_i32, %c0_i32_0 : i32, i32
  }
  func.func @transform_2(%arg0: i32) -> (i32, i32) {
    %c0_i32 = arith.constant 0 : i32
    %c0_i32_0 = arith.constant 0 : i32
    %c0_i32_1 = arith.constant 0 : i32
    return %c0_i32, %c0_i32_0 : i32, i32
  }
  func.func @transform_3(%arg0: i32) -> (i32, i32) {
    %c0_i32 = arith.constant 0 : i32
    %c0_i32_0 = arith.constant 0 : i32
    %c0_i32_1 = arith.constant 0 : i32
    return %c0_i32, %c0_i32_0 : i32, i32
  }
  func.func @transform_4(%arg0: i32) -> (i32, i32) {
    %c0_i32 = arith.constant 0 : i32
    %c0_i32_0 = arith.constant 0 : i32
    %c0_i32_1 = arith.constant 0 : i32
    return %c0_i32, %c0_i32_0 : i32, i32
  }
  func.func @transform_5(%arg0: i32) -> (i32, i32) {
    %c0_i32 = arith.constant 0 : i32
    %c0_i32_0 = arith.constant 0 : i32
    %c0_i32_1 = arith.constant 0 : i32
    return %c0_i32, %c0_i32_0 : i32, i32
  }
  func.func @transform_6(%arg0: i32) -> (i32, i32) {
    %c0_i32 = arith.constant 0 : i32
    %c0_i32_0 = arith.constant 0 : i32
    %c0_i32_1 = arith.constant 0 : i32
    return %c0_i32, %c0_i32_0 : i32, i32
  }
  func.func @transform_7(%arg0: i32) -> (i32, i32) {
    %c0_i32 = arith.constant 0 : i32
    %c0_i32_0 = arith.constant 0 : i32
    %c0_i32_1 = arith.constant 0 : i32
    return %c0_i32, %c0_i32_0 : i32, i32
  }
  func.func @transform_8(%arg0: i32) -> (i32, i32) {
    %c0_i32 = arith.constant 0 : i32
    %c0_i32_0 = arith.constant 0 : i32
    %c0_i32_1 = arith.constant 0 : i32
    return %c0_i32, %c0_i32_0 : i32, i32
  }
  func.func @transform_9(%arg0: i32) -> (i32, i32) {
    %c0_i32 = arith.constant 0 : i32
    %c0_i32_0 = arith.constant 0 : i32
    return %arg0, %c0_i32 : i32, i32
  }
}

</mosaic_0001>

<llo_original>
// kernel: mlp_forward.1
$region0: #{mlp_forward.1}
  #allocation0 [shape = 'u32[]', space=smem, size = 0x4, offset = 0x4, fixed_abs, tag = 'smem constant byte address 0x4 - core index']
  #allocation1 [shape = 'u32[144,128]{1,0:T(1,128)}', space=vmem, size = 0x12000, scoped, tag = 'internal scratch']
  %s0 = inlined_call_operand.vmem [shape: bf16[16,1400], index: 0, kind: input, shape index: {}]
  %s1 = inlined_call_operand.hbm [shape: bf16[1400,512], index: 1, kind: input, shape index: {}]
  %s2 = inlined_call_operand.hbm [shape: f32[1,512], index: 2, kind: input, shape index: {}]
  %s3 = inlined_call_operand.hbm [shape: bf16[512,128], index: 3, kind: input, shape index: {}]
  %s4 = inlined_call_operand.hbm [shape: f32[1,128], index: 4, kind: input, shape index: {}]
  %s5 = inlined_call_operand.vmem [shape: bf16[128,32], index: 5, kind: input, shape index: {}]
  %s6 = inlined_call_operand.hbm [shape: f32[1,32], index: 6, kind: input, shape index: {}]
  %s7 = inlined_call_operand.hbm [shape: bf16[32,128], index: 7, kind: input, shape index: {}]
  %s8 = inlined_call_operand.hbm [shape: f32[1,128], index: 8, kind: input, shape index: {}]
  %s9 = inlined_call_operand.vmem [shape: bf16[16,128], index: 9, kind: output, shape index: {}]
  %s10 = sld [smem:[#allocation0]]
  $region74: #{mlp_forward.1} parent=0
    _
  %s12 = ssub.s32 1, %s10
  %s13 = scalar_select 0, %s12, %s10
  $region1: #{mlp_forward.1} parent=0
    #allocation2 [shape = 'u8[1433600]{0}', space=vmem, size = 0x15e000, scoped, tag = 'input window, operand 1, single buffered']
    #allocation3 [shape = 's32[1]{0}', space=sflag, size = 0x4, scoped, tag = 'scoped memory for mlp_forward.1']
    #allocation4 [shape = 'u8[2048]{0}', space=vmem, size = 0x800, scoped, tag = 'input window, operand 2, single buffered']
    #allocation5 [shape = 's32[1]{0}', space=sflag, size = 0x4, scoped, tag = 'scoped memory for mlp_forward.1']
    #allocation6 [shape = 'u8[131072]{0}', space=vmem, size = 0x20000, scoped, tag = 'input window, operand 3, single buffered']
    #allocation7 [shape = 'u8[512]{0}', space=vmem, size = 0x400, scoped, tag = 'input window, operand 4, single buffered']
    #allocation8 [shape = 's32[1]{0}', space=sflag, size = 0x4, scoped, tag = 'scoped memory for mlp_forward.1']
    #allocation9 [shape = 'u8[512]{0}', space=vmem, size = 0x400, scoped, tag = 'input window, operand 6, single buffered']
    #allocation10 [shape = 'u8[8192]{0}', space=vmem, size = 0x2000, scoped, tag = 'input window, operand 7, single buffered']
    #allocation11 [shape = 's32[1]{0}', space=sflag, size = 0x4, scoped, tag = 'scoped memory for mlp_forward.1']
    #allocation12 [shape = 'u8[512]{0}', space=vmem, size = 0x400, scoped, tag = 'input window, operand 8, single buffered']
    %14 = vsyncpa [#allocation3], 0
    %15 = vsyncpa [#allocation5], 0
    %16 = vsyncpa [#allocation8], 0
    %17 = vsyncpa [#allocation11], 0
    // Predicated region
    $region2: #{mlp_forward.1} parent=1 // pred_check
      _
    $region3: #{mlp_forward.1} parent=1 // pred_check_branch
      %19 = sbr.rel (0) target = $region5
    $region4: #{mlp_forward.1} parent=1 // pred_region
      _
    $region5: #{mlp_forward.1} parent=1 // pred_fallthru
      _
    // Predicated region
    $region6: #{mlp_forward.1} parent=1 // pred_check
      _
    $region7: #{mlp_forward.1} parent=1 // pred_check_branch
      %21 = sbr.rel (0) target = $region9
    $region8: #{mlp_forward.1} parent=1 // pred_region
      %s23 = ssub.s32 44800, 44800
      %24 = vsyncadd [#allocation3], %s23
      %s25 = sshll.u32 [#allocation2], 4
      %s26 = int_to_ptr.vmem [resolvable:$true] %s25
      %31 = dma.hbm_to_vmem [thread:$0]  %s1, 44800, %s26, [#allocation3], 256, 256, 16
    $region9: #{mlp_forward.1} parent=1 // pred_fallthru
      _
    // Predicated region
    $region10: #{mlp_forward.1} parent=1 // pred_check
      _
    $region11: #{mlp_forward.1} parent=1 // pred_check_branch
      %33 = sbr.rel (0) target = $region13
    $region12: #{mlp_forward.1} parent=1 // pred_region
      %s35 = ssub.s32 64, 64
      %36 = vsyncadd [#allocation5], %s35
      %s38 = sshll.u32 [#allocation4], 4
      %s39 = int_to_ptr.vmem [resolvable:$true] %s38
      %41 = dma.hbm_to_vmem [thread:$0]  %s2, 64, %s39, [#allocation5]
    $region13: #{mlp_forward.1} parent=1 // pred_fallthru
      _
    // Predicated region
    $region14: #{mlp_forward.1} parent=1 // pred_check
      _
    $region15: #{mlp_forward.1} parent=1 // pred_check_branch
      %43 = sbr.rel (0) target = $region17
    $region16: #{mlp_forward.1} parent=1 // pred_region
      %s45 = ssub.s32 4096, 4096
      %46 = vsyncadd [#allocation5], %s45
      %s47 = sshll.u32 [#allocation6], 4
      %s48 = int_to_ptr.vmem [resolvable:$true] %s47
      %53 = dma.hbm_to_vmem [thread:$0]  %s3, 4096, %s48, [#allocation5], 64, 64, 4
    $region17: #{mlp_forward.1} parent=1 // pred_fallthru
      _
    // Predicated region
    $region18: #{mlp_forward.1} parent=1 // pred_check
      _
    $region19: #{mlp_forward.1} parent=1 // pred_check_branch
      %55 = sbr.rel (0) target = $region21
    $region20: #{mlp_forward.1} parent=1 // pred_region
      %s57 = ssub.s32 16, 16
      %58 = vsyncadd [#allocation8], %s57
      %s60 = sshll.u32 [#allocation7], 4
      %s61 = int_to_ptr.vmem [resolvable:$true] %s60
      %63 = dma.hbm_to_vmem [thread:$0]  %s4, 16, %s61, [#allocation8]
    $region21: #{mlp_forward.1} parent=1 // pred_fallthru
      _
    // Predicated region
    $region22: #{mlp_forward.1} parent=1 // pred_check
      _
    $region23: #{mlp_forward.1} parent=1 // pred_check_branch
      %65 = sbr.rel (0) target = $region25
    $region24: #{mlp_forward.1} parent=1 // pred_region
      _
    $region25: #{mlp_forward.1} parent=1 // pred_fallthru
      _
    // Predicated region
    $region26: #{mlp_forward.1} parent=1 // pred_check
      _
    $region27: #{mlp_forward.1} parent=1 // pred_check_branch
      %67 = sbr.rel (0) target = $region29
    $region28: #{mlp_forward.1} parent=1 // pred_region
      %s69 = ssub.s32 16, 16
      %70 = vsyncadd [#allocation8], %s69
      %s72 = sshll.u32 [#allocation9], 4
      %s73 = int_to_ptr.vmem [resolvable:$true] %s72
      %75 = dma.hbm_to_vmem [thread:$0]  %s6, 16, %s73, [#allocation8]
    $region29: #{mlp_forward.1} parent=1 // pred_fallthru
      _
    // Predicated region
    $region30: #{mlp_forward.1} parent=1 // pred_check
      _
    $region31: #{mlp_forward.1} parent=1 // pred_check_branch
      %77 = sbr.rel (0) target = $region33
    $region32: #{mlp_forward.1} parent=1 // pred_region
      %s79 = ssub.s32 256, 256
      %80 = vsyncadd [#allocation11], %s79
      %s81 = sshll.u32 [#allocation10], 4
      %s82 = int_to_ptr.vmem [resolvable:$true] %s81
      %87 = dma.hbm_to_vmem [thread:$0]  %s7, 256, %s82, [#allocation11], 64, 64, 4
    $region33: #{mlp_forward.1} parent=1 // pred_fallthru
      _
    // Predicated region
    $region34: #{mlp_forward.1} parent=1 // pred_check
      _
    $region35: #{mlp_forward.1} parent=1 // pred_check_branch
      %89 = sbr.rel (0) target = $region37
    $region36: #{mlp_forward.1} parent=1 // pred_region
      %s91 = ssub.s32 16, 16
      %92 = vsyncadd [#allocation11], %s91
      %s94 = sshll.u32 [#allocation12], 4
      %s95 = int_to_ptr.vmem [resolvable:$true] %s94
      %97 = dma.hbm_to_vmem [thread:$0]  %s8, 16, %s95, [#allocation11]
    $region37: #{mlp_forward.1} parent=1 // pred_fallthru
      _
    // Predicated region
    $region38: #{mlp_forward.1} parent=1 // pred_check
      _
    $region39: #{mlp_forward.1} parent=1 // pred_check_branch
      %99 = sbr.rel (0) target = $region41
    $region40: #{mlp_forward.1} parent=1 // pred_region
      %100 = dma.done [#allocation3], 44800
    $region41: #{mlp_forward.1} parent=1 // pred_fallthru
      _
    // Predicated region
    $region42: #{mlp_forward.1} parent=1 // pred_check
      _
    $region43: #{mlp_forward.1} parent=1 // pred_check_branch
      %102 = sbr.rel (0) target = $region45
    $region44: #{mlp_forward.1} parent=1 // pred_region
      %103 = dma.done [#allocation5], 64
    $region45: #{mlp_forward.1} parent=1 // pred_fallthru
      _
    // Predicated region
    $region46: #{mlp_forward.1} parent=1 // pred_check
      _
    $region47: #{mlp_forward.1} parent=1 // pred_check_branch
      %105 = sbr.rel (0) target = $region49
    $region48: #{mlp_forward.1} parent=1 // pred_region
      %106 = dma.done [#allocation5], 4096
    $region49: #{mlp_forward.1} parent=1 // pred_fallthru
      _
    // Predicated region
    $region50: #{mlp_forward.1} parent=1 // pred_check
      _
    $region51: #{mlp_forward.1} parent=1 // pred_check_branch
      %108 = sbr.rel (0) target = $region53
    $region52: #{mlp_forward.1} parent=1 // pred_region
      %109 = dma.done [#allocation8], 16
    $region53: #{mlp_forward.1} parent=1 // pred_fallthru
      _
    // Predicated region
    $region54: #{mlp_forward.1} parent=1 // pred_check
      _
    $region55: #{mlp_forward.1} parent=1 // pred_check_branch
      %111 = sbr.rel (0) target = $region57
    $region56: #{mlp_forward.1} parent=1 // pred_region
      %112 = dma.done [#allocation8], 16
    $region57: #{mlp_forward.1} parent=1 // pred_fallthru
      _
    // Predicated region
    $region58: #{mlp_forward.1} parent=1 // pred_check
      _
    $region59: #{mlp_forward.1} parent=1 // pred_check_branch
      %114 = sbr.rel (0) target = $region61
    $region60: #{mlp_forward.1} parent=1 // pred_region
      %115 = dma.done [#allocation11], 256
    $region61: #{mlp_forward.1} parent=1 // pred_fallthru
      _
    // Predicated region
    $region62: #{mlp_forward.1} parent=1 // pred_check
      _
    $region63: #{mlp_forward.1} parent=1 // pred_check_branch
      %117 = sbr.rel (0) target = $region65
    $region64: #{mlp_forward.1} parent=1 // pred_region
      %118 = dma.done [#allocation11], 16
    $region65: #{mlp_forward.1} parent=1 // pred_fallthru
      _
    %v120 = vld [vmem:[%s0] sm:$0xff]
    %v121 = vld [vmem:[%s0 + $0x8] sm:$0xff]
    %v122 = vld [vmem:[%s0 + $0x10] sm:$0xff]
    %v123 = vld [vmem:[%s0 + $0x18] sm:$0xff]
    %v124 = vld [vmem:[%s0 + $0x20] sm:$0xff]
    %v125 = vld [vmem:[%s0 + $0x28] sm:$0xf]
    %v126 = vld [vmem:[%s0 + $0x2c] sm:$0xff]
    %v127 = vld [vmem:[%s0 + $0x34] sm:$0xff]
    %v128 = vld [vmem:[%s0 + $0x3c] sm:$0xff]
    %v129 = vld [vmem:[%s0 + $0x44] sm:$0xff]
    %v130 = vld [vmem:[%s0 + $0x4c] sm:$0xff]
    %v131 = vld [vmem:[%s0 + $0x54] sm:$0xf]
    %v132 = vld [vmem:[#allocation2] sm:$0xff]
    %v133 = vld [vmem:[#allocation2 + $0x8] sm:$0xff]
    %v134 = vld [vmem:[#allocation2 + $0x10] sm:$0xff]
    %v135 = vld [vmem:[#allocation2 + $0x18] sm:$0xff]
    %v136 = vld [vmem:[#allocation2 + $0x20] sm:$0xff]
    %v137 = vld [vmem:[#allocation2 + $0x28] sm:$0xff]
    %v138 = vld [vmem:[#allocation2 + $0x30] sm:$0xff]
    %v139 = vld [vmem:[#allocation2 + $0x38] sm:$0xff]
    %v140 = vld [vmem:[#allocation2 + $0x40] sm:$0xff]
    %v141 = vld [vmem:[#allocation2 + $0x48] sm:$0xff]
    %v142 = vld [vmem:[#allocation2 + $0x50] sm:$0xff]
    %v143 = vld [vmem:[#allocation2 + $0x58] sm:$0xff]
    %v144 = vld [vmem:[#allocation2 + $0x60] sm:$0xff]
    %v145 = vld [vmem:[#allocation2 + $0x68] sm:$0xff]
    %v146 = vld [vmem:[#allocation2 + $0x70] sm:$0xff]
    %v147 = vld [vmem:[#allocation2 + $0x78] sm:$0xff]
    %v148 = vld [vmem:[#allocation2 + $0x80] sm:$0xff]
    %v149 = vld [vmem:[#allocation2 + $0x88] sm:$0xff]
    %v150 = vld [vmem:[#allocation2 + $0x90] sm:$0xff]
    %v151 = vld [vmem:[#allocation2 + $0x98] sm:$0xff]
    %v152 = vld [vmem:[#allocation2 + $0xa0] sm:$0xff]
    %v153 = vld [vmem:[#allocation2 + $0xa8] sm:$0xff]
    %v154 = vld [vmem:[#allocation2 + $0xb0] sm:$0xff]
    %v155 = vld [vmem:[#allocation2 + $0xb8] sm:$0xff]
    %v156 = vld [vmem:[#allocation2 + $0xc0] sm:$0xff]
    %v157 = vld [vmem:[#allocation2 + $0xc8] sm:$0xff]
    %v158 = vld [vmem:[#allocation2 + $0xd0] sm:$0xff]
    %v159 = vld [vmem:[#allocation2 + $0xd8] sm:$0xff]
    %v160 = vld [vmem:[#allocation2 + $0xe0] sm:$0xff]
    %v161 = vld [vmem:[#allocation2 + $0xe8] sm:$0xff]
    %v162 = vld [vmem:[#allocation2 + $0xf0] sm:$0xff]
    %v163 = vld [vmem:[#allocation2 + $0xf8] sm:$0xff]
    %v164 = vld [vmem:[#allocation2 + $0x100] sm:$0xff]
    %v165 = vld [vmem:[#allocation2 + $0x108] sm:$0xff]
    %v166 = vld [vmem:[#allocation2 + $0x110] sm:$0xff]
    %v167 = vld [vmem:[#allocation2 + $0x118] sm:$0xff]
    %v168 = vld [vmem:[#allocation2 + $0x120] sm:$0xff]
    %v169 = vld [vmem:[#allocation2 + $0x128] sm:$0xff]
    %v170 = vld [vmem:[#allocation2 + $0x130] sm:$0xff]
    %v171 = vld [vmem:[#allocation2 + $0x138] sm:$0xff]
    %v172 = vld [vmem:[#allocation2 + $0x140] sm:$0xff]
    %v173 = vld [vmem:[#allocation2 + $0x148] sm:$0xff]
    %v174 = vld [vmem:[#allocation2 + $0x150] sm:$0xff]
    %v175 = vld [vmem:[#allocation2 + $0x158] sm:$0xff]
    %v176 = vld [vmem:[#allocation2 + $0x160] sm:$0xff]
    %v177 = vld [vmem:[#allocation2 + $0x168] sm:$0xff]
    %v178 = vld [vmem:[#allocation2 + $0x170] sm:$0xff]
    %v179 = vld [vmem:[#allocation2 + $0x178] sm:$0xff]
    %v180 = vld [vmem:[#allocation2 + $0x180] sm:$0xff]
    %v181 = vld [vmem:[#allocation2 + $0x188] sm:$0xff]
    %v182 = vld [vmem:[#allocation2 + $0x190] sm:$0xff]
    %v183 = vld [vmem:[#allocation2 + $0x198] sm:$0xff]
    %v184 = vld [vmem:[#allocation2 + $0x1a0] sm:$0xff]
    %v185 = vld [vmem:[#allocation2 + $0x1a8] sm:$0xff]
    %v186 = vld [vmem:[#allocation2 + $0x1b0] sm:$0xff]
    %v187 = vld [vmem:[#allocation2 + $0x1b8] sm:$0xff]
    %v188 = vld [vmem:[#allocation2 + $0x1c0] sm:$0xff]
    %v189 = vld [vmem:[#allocation2 + $0x1c8] sm:$0xff]
    %v190 = vld [vmem:[#allocation2 + $0x1d0] sm:$0xff]
    %v191 = vld [vmem:[#allocation2 + $0x1d8] sm:$0xff]
    %v192 = vld [vmem:[#allocation2 + $0x1e0] sm:$0xff]
    %v193 = vld [vmem:[#allocation2 + $0x1e8] sm:$0xff]
    %v194 = vld [vmem:[#allocation2 + $0x1f0] sm:$0xff]
    %v195 = vld [vmem:[#allocation2 + $0x1f8] sm:$0xff]
    %v196 = vld [vmem:[#allocation2 + $0x200] sm:$0xff]
    %v197 = vld [vmem:[#allocation2 + $0x208] sm:$0xff]
    %v198 = vld [vmem:[#allocation2 + $0x210] sm:$0xff]
    %v199 = vld [vmem:[#allocation2 + $0x218] sm:$0xff]
    %v200 = vld [vmem:[#allocation2 + $0x220] sm:$0xff]
    %v201 = vld [vmem:[#allocation2 + $0x228] sm:$0xff]
    %v202 = vld [vmem:[#allocation2 + $0x230] sm:$0xff]
    %v203 = vld [vmem:[#allocation2 + $0x238] sm:$0xff]
    %v204 = vld [vmem:[#allocation2 + $0x240] sm:$0xff]
    %v205 = vld [vmem:[#allocation2 + $0x248] sm:$0xff]
    %v206 = vld [vmem:[#allocation2 + $0x250] sm:$0xff]
    %v207 = vld [vmem:[#allocation2 + $0x258] sm:$0xff]
    %v208 = vld [vmem:[#allocation2 + $0x260] sm:$0xff]
    %v209 = vld [vmem:[#allocation2 + $0x268] sm:$0xff]
    %v210 = vld [vmem:[#allocation2 + $0x270] sm:$0xff]
    %v211 = vld [vmem:[#allocation2 + $0x278] sm:$0xff]
    %v212 = vld [vmem:[#allocation2 + $0x280] sm:$0xff]
    %v213 = vld [vmem:[#allocation2 + $0x288] sm:$0xff]
    %v214 = vld [vmem:[#allocation2 + $0x290] sm:$0xff]
    %v215 = vld [vmem:[#allocation2 + $0x298] sm:$0xff]
    %v216 = vld [vmem:[#allocation2 + $0x2a0] sm:$0xff]
    %v217 = vld [vmem:[#allocation2 + $0x2a8] sm:$0xff]
    %v218 = vld [vmem:[#allocation2 + $0x2b0] sm:$0xff]
    %v219 = vld [vmem:[#allocation2 + $0x2b8] sm:$0xff]
    %v220 = vld [vmem:[#allocation2 + $0x2c0] sm:$0xff]
    %v221 = vld [vmem:[#allocation2 + $0x2c8] sm:$0xff]
    %v222 = vld [vmem:[#allocation2 + $0x2d0] sm:$0xff]
    %v223 = vld [vmem:[#allocation2 + $0x2d8] sm:$0xff]
    %v224 = vld [vmem:[#allocation2 + $0x2e0] sm:$0xff]
    %v225 = vld [vmem:[#allocation2 + $0x2e8] sm:$0xff]
    %v226 = vld [vmem:[#allocation2 + $0x2f0] sm:$0xff]
    %v227 = vld [vmem:[#allocation2 + $0x2f8] sm:$0xff]
    %v228 = vld [vmem:[#allocation2 + $0x300] sm:$0xff]
    %v229 = vld [vmem:[#allocation2 + $0x308] sm:$0xff]
    %v230 = vld [vmem:[#allocation2 + $0x310] sm:$0xff]
    %v231 = vld [vmem:[#allocation2 + $0x318] sm:$0xff]
    %v232 = vld [vmem:[#allocation2 + $0x320] sm:$0xff]
    %v233 = vld [vmem:[#allocation2 + $0x328] sm:$0xff]
    %v234 = vld [vmem:[#allocation2 + $0x330] sm:$0xff]
    %v235 = vld [vmem:[#allocation2 + $0x338] sm:$0xff]
    %v236 = vld [vmem:[#allocation2 + $0x340] sm:$0xff]
    %v237 = vld [vmem:[#allocation2 + $0x348] sm:$0xff]
    %v238 = vld [vmem:[#allocation2 + $0x350] sm:$0xff]
    %v239 = vld [vmem:[#allocation2 + $0x358] sm:$0xff]
    %v240 = vld [vmem:[#allocation2 + $0x360] sm:$0xff]
    %v241 = vld [vmem:[#allocation2 + $0x368] sm:$0xff]
    %v242 = vld [vmem:[#allocation2 + $0x370] sm:$0xff]
    %v243 = vld [vmem:[#allocation2 + $0x378] sm:$0xff]
    %v244 = vld [vmem:[#allocation2 + $0x380] sm:$0xff]
    %v245 = vld [vmem:[#allocation2 + $0x388] sm:$0xff]
    %v246 = vld [vmem:[#allocation2 + $0x390] sm:$0xff]
    %v247 = vld [vmem:[#allocation2 + $0x398] sm:$0xff]
    %v248 = vld [vmem:[#allocation2 + $0x3a0] sm:$0xff]
    %v249 = vld [vmem:[#allocation2 + $0x3a8] sm:$0xff]
    %v250 = vld [vmem:[#allocation2 + $0x3b0] sm:$0xff]
    %v251 = vld [vmem:[#allocation2 + $0x3b8] sm:$0xff]
    %v252 = vld [vmem:[#allocation2 + $0x3c0] sm:$0xff]
    %v253 = vld [vmem:[#allocation2 + $0x3c8] sm:$0xff]
    %v254 = vld [vmem:[#allocation2 + $0x3d0] sm:$0xff]
    %v255 = vld [vmem:[#allocation2 + $0x3d8] sm:$0xff]
    %v256 = vld [vmem:[#allocation2 + $0x3e0] sm:$0xff]
    %v257 = vld [vmem:[#allocation2 + $0x3e8] sm:$0xff]
    %v258 = vld [vmem:[#allocation2 + $0x3f0] sm:$0xff]
    %v259 = vld [vmem:[#allocation2 + $0x3f8] sm:$0xff]
    %v260 = vld [vmem:[#allocation2 + $0x400] sm:$0xff]
    %v261 = vld [vmem:[#allocation2 + $0x408] sm:$0xff]
    %v262 = vld [vmem:[#allocation2 + $0x410] sm:$0xff]
    %v263 = vld [vmem:[#allocation2 + $0x418] sm:$0xff]
    %v264 = vld [vmem:[#allocation2 + $0x420] sm:$0xff]
    %v265 = vld [vmem:[#allocation2 + $0x428] sm:$0xff]
    %v266 = vld [vmem:[#allocation2 + $0x430] sm:$0xff]
    %v267 = vld [vmem:[#allocation2 + $0x438] sm:$0xff]
    %v268 = vld [vmem:[#allocation2 + $0x440] sm:$0xff]
    %v269 = vld [vmem:[#allocation2 + $0x448] sm:$0xff]
    %v270 = vld [vmem:[#allocation2 + $0x450] sm:$0xff]
    %v271 = vld [vmem:[#allocation2 + $0x458] sm:$0xff]
    %v272 = vld [vmem:[#allocation2 + $0x460] sm:$0xff]
    %v273 = vld [vmem:[#allocation2 + $0x468] sm:$0xff]
    %v274 = vld [vmem:[#allocation2 + $0x470] sm:$0xff]
    %v275 = vld [vmem:[#allocation2 + $0x478] sm:$0xff]
    %v276 = vld [vmem:[#allocation2 + $0x480] sm:$0xff]
    %v277 = vld [vmem:[#allocation2 + $0x488] sm:$0xff]
    %v278 = vld [vmem:[#allocation2 + $0x490] sm:$0xff]
    %v279 = vld [vmem:[#allocation2 + $0x498] sm:$0xff]
    %v280 = vld [vmem:[#allocation2 + $0x4a0] sm:$0xff]
    %v281 = vld [vmem:[#allocation2 + $0x4a8] sm:$0xff]
    %v282 = vld [vmem:[#allocation2 + $0x4b0] sm:$0xff]
    %v283 = vld [vmem:[#allocation2 + $0x4b8] sm:$0xff]
    %v284 = vld [vmem:[#allocation2 + $0x4c0] sm:$0xff]
    %v285 = vld [vmem:[#allocation2 + $0x4c8] sm:$0xff]
    %v286 = vld [vmem:[#allocation2 + $0x4d0] sm:$0xff]
    %v287 = vld [vmem:[#allocation2 + $0x4d8] sm:$0xff]
    %v288 = vld [vmem:[#allocation2 + $0x4e0] sm:$0xff]
    %v289 = vld [vmem:[#allocation2 + $0x4e8] sm:$0xff]
    %v290 = vld [vmem:[#allocation2 + $0x4f0] sm:$0xff]
    %v291 = vld [vmem:[#allocation2 + $0x4f8] sm:$0xff]
    %v292 = vld [vmem:[#allocation2 + $0x500] sm:$0xff]
    %v293 = vld [vmem:[#allocation2 + $0x508] sm:$0xff]
    %v294 = vld [vmem:[#allocation2 + $0x510] sm:$0xff]
    %v295 = vld [vmem:[#allocation2 + $0x518] sm:$0xff]
    %v296 = vld [vmem:[#allocation2 + $0x520] sm:$0xff]
    %v297 = vld [vmem:[#allocation2 + $0x528] sm:$0xff]
    %v298 = vld [vmem:[#allocation2 + $0x530] sm:$0xff]
    %v299 = vld [vmem:[#allocation2 + $0x538] sm:$0xff]
    %v300 = vld [vmem:[#allocation2 + $0x540] sm:$0xff]
    %v301 = vld [vmem:[#allocation2 + $0x548] sm:$0xff]
    %v302 = vld [vmem:[#allocation2 + $0x550] sm:$0xff]
    %v303 = vld [vmem:[#allocation2 + $0x558] sm:$0xff]
    %v304 = vld [vmem:[#allocation2 + $0x560] sm:$0xff]
    %v305 = vld [vmem:[#allocation2 + $0x568] sm:$0xff]
    %v306 = vld [vmem:[#allocation2 + $0x570] sm:$0xff]
    %v307 = vld [vmem:[#allocation2 + $0x578] sm:$0xff]
    %v308 = vld [vmem:[#allocation2 + $0x580] sm:$0xff]
    %v309 = vld [vmem:[#allocation2 + $0x588] sm:$0xff]
    %v310 = vld [vmem:[#allocation2 + $0x590] sm:$0xff]
    %v311 = vld [vmem:[#allocation2 + $0x598] sm:$0xff]
    %v312 = vld [vmem:[#allocation2 + $0x5a0] sm:$0xff]
    %v313 = vld [vmem:[#allocation2 + $0x5a8] sm:$0xff]
    %v314 = vld [vmem:[#allocation2 + $0x5b0] sm:$0xff]
    %v315 = vld [vmem:[#allocation2 + $0x5b8] sm:$0xff]
    %v316 = vld [vmem:[#allocation2 + $0x5c0] sm:$0xff]
    %v317 = vld [vmem:[#allocation2 + $0x5c8] sm:$0xff]
    %v318 = vld [vmem:[#allocation2 + $0x5d0] sm:$0xff]
    %v319 = vld [vmem:[#allocation2 + $0x5d8] sm:$0xff]
    %v320 = vld [vmem:[#allocation2 + $0x5e0] sm:$0xff]
    %v321 = vld [vmem:[#allocation2 + $0x5e8] sm:$0xff]
    %v322 = vld [vmem:[#allocation2 + $0x5f0] sm:$0xff]
    %v323 = vld [vmem:[#allocation2 + $0x5f8] sm:$0xff]
    %v324 = vld [vmem:[#allocation2 + $0x600] sm:$0xff]
    %v325 = vld [vmem:[#allocation2 + $0x608] sm:$0xff]
    %v326 = vld [vmem:[#allocation2 + $0x610] sm:$0xff]
    %v327 = vld [vmem:[#allocation2 + $0x618] sm:$0xff]
    %v328 = vld [vmem:[#allocation2 + $0x620] sm:$0xff]
    %v329 = vld [vmem:[#allocation2 + $0x628] sm:$0xff]
    %v330 = vld [vmem:[#allocation2 + $0x630] sm:$0xff]
    %v331 = vld [vmem:[#allocation2 + $0x638] sm:$0xff]
    %v332 = vld [vmem:[#allocation2 + $0x640] sm:$0xff]
    %v333 = vld [vmem:[#allocation2 + $0x648] sm:$0xff]
    %v334 = vld [vmem:[#allocation2 + $0x650] sm:$0xff]
    %v335 = vld [vmem:[#allocation2 + $0x658] sm:$0xff]
    %v336 = vld [vmem:[#allocation2 + $0x660] sm:$0xff]
    %v337 = vld [vmem:[#allocation2 + $0x668] sm:$0xff]
    %v338 = vld [vmem:[#allocation2 + $0x670] sm:$0xff]
    %v339 = vld [vmem:[#allocation2 + $0x678] sm:$0xff]
    %v340 = vld [vmem:[#allocation2 + $0x680] sm:$0xff]
    %v341 = vld [vmem:[#allocation2 + $0x688] sm:$0xff]
    %v342 = vld [vmem:[#allocation2 + $0x690] sm:$0xff]
    %v343 = vld [vmem:[#allocation2 + $0x698] sm:$0xff]
    %v344 = vld [vmem:[#allocation2 + $0x6a0] sm:$0xff]
    %v345 = vld [vmem:[#allocation2 + $0x6a8] sm:$0xff]
    %v346 = vld [vmem:[#allocation2 + $0x6b0] sm:$0xff]
    %v347 = vld [vmem:[#allocation2 + $0x6b8] sm:$0xff]
    %v348 = vld [vmem:[#allocation2 + $0x6c0] sm:$0xff]
    %v349 = vld [vmem:[#allocation2 + $0x6c8] sm:$0xff]
    %v350 = vld [vmem:[#allocation2 + $0x6d0] sm:$0xff]
    %v351 = vld [vmem:[#allocation2 + $0x6d8] sm:$0xff]
    %v352 = vld [vmem:[#allocation2 + $0x6e0] sm:$0xff]
    %v353 = vld [vmem:[#allocation2 + $0x6e8] sm:$0xff]
    %v354 = vld [vmem:[#allocation2 + $0x6f0] sm:$0xff]
    %v355 = vld [vmem:[#allocation2 + $0x6f8] sm:$0xff]
    %v356 = vld [vmem:[#allocation2 + $0x700] sm:$0xff]
    %v357 = vld [vmem:[#allocation2 + $0x708] sm:$0xff]
    %v358 = vld [vmem:[#allocation2 + $0x710] sm:$0xff]
    %v359 = vld [vmem:[#allocation2 + $0x718] sm:$0xff]
    %v360 = vld [vmem:[#allocation2 + $0x720] sm:$0xff]
    %v361 = vld [vmem:[#allocation2 + $0x728] sm:$0xff]
    %v362 = vld [vmem:[#allocation2 + $0x730] sm:$0xff]
    %v363 = vld [vmem:[#allocation2 + $0x738] sm:$0xff]
    %v364 = vld [vmem:[#allocation2 + $0x740] sm:$0xff]
    %v365 = vld [vmem:[#allocation2 + $0x748] sm:$0xff]
    %v366 = vld [vmem:[#allocation2 + $0x750] sm:$0xff]
    %v367 = vld [vmem:[#allocation2 + $0x758] sm:$0xff]
    %v368 = vld [vmem:[#allocation2 + $0x760] sm:$0xff]
    %v369 = vld [vmem:[#allocation2 + $0x768] sm:$0xff]
    %v370 = vld [vmem:[#allocation2 + $0x770] sm:$0xff]
    %v371 = vld [vmem:[#allocation2 + $0x778] sm:$0xff]
    %v372 = vld [vmem:[#allocation2 + $0x780] sm:$0xff]
    %v373 = vld [vmem:[#allocation2 + $0x788] sm:$0xff]
    %v374 = vld [vmem:[#allocation2 + $0x790] sm:$0xff]
    %v375 = vld [vmem:[#allocation2 + $0x798] sm:$0xff]
    %v376 = vld [vmem:[#allocation2 + $0x7a0] sm:$0xff]
    %v377 = vld [vmem:[#allocation2 + $0x7a8] sm:$0xff]
    %v378 = vld [vmem:[#allocation2 + $0x7b0] sm:$0xff]
    %v379 = vld [vmem:[#allocation2 + $0x7b8] sm:$0xff]
    %v380 = vld [vmem:[#allocation2 + $0x7c0] sm:$0xff]
    %v381 = vld [vmem:[#allocation2 + $0x7c8] sm:$0xff]
    %v382 = vld [vmem:[#allocation2 + $0x7d0] sm:$0xff]
    %v383 = vld [vmem:[#allocation2 + $0x7d8] sm:$0xff]
    %v384 = vld [vmem:[#allocation2 + $0x7e0] sm:$0xff]
    %v385 = vld [vmem:[#allocation2 + $0x7e8] sm:$0xff]
    %v386 = vld [vmem:[#allocation2 + $0x7f0] sm:$0xff]
    %v387 = vld [vmem:[#allocation2 + $0x7f8] sm:$0xff]
    %v388 = vld [vmem:[#allocation2 + $0x800] sm:$0xff]
    %v389 = vld [vmem:[#allocation2 + $0x808] sm:$0xff]
    %v390 = vld [vmem:[#allocation2 + $0x810] sm:$0xff]
    %v391 = vld [vmem:[#allocation2 + $0x818] sm:$0xff]
    %v392 = vld [vmem:[#allocation2 + $0x820] sm:$0xff]
    %v393 = vld [vmem:[#allocation2 + $0x828] sm:$0xff]
    %v394 = vld [vmem:[#allocation2 + $0x830] sm:$0xff]
    %v395 = vld [vmem:[#allocation2 + $0x838] sm:$0xff]
    %v396 = vld [vmem:[#allocation2 + $0x840] sm:$0xff]
    %v397 = vld [vmem:[#allocation2 + $0x848] sm:$0xff]
    %v398 = vld [vmem:[#allocation2 + $0x850] sm:$0xff]
    %v399 = vld [vmem:[#allocation2 + $0x858] sm:$0xff]
    %v400 = vld [vmem:[#allocation2 + $0x860] sm:$0xff]
    %v401 = vld [vmem:[#allocation2 + $0x868] sm:$0xff]
    %v402 = vld [vmem:[#allocation2 + $0x870] sm:$0xff]
    %v403 = vld [vmem:[#allocation2 + $0x878] sm:$0xff]
    %v404 = vld [vmem:[#allocation2 + $0x880] sm:$0xff]
    %v405 = vld [vmem:[#allocation2 + $0x888] sm:$0xff]
    %v406 = vld [vmem:[#allocation2 + $0x890] sm:$0xff]
    %v407 = vld [vmem:[#allocation2 + $0x898] sm:$0xff]
    %v408 = vld [vmem:[#allocation2 + $0x8a0] sm:$0xff]
    %v409 = vld [vmem:[#allocation2 + $0x8a8] sm:$0xff]
    %v410 = vld [vmem:[#allocation2 + $0x8b0] sm:$0xff]
    %v411 = vld [vmem:[#allocation2 + $0x8b8] sm:$0xff]
    %v412 = vld [vmem:[#allocation2 + $0x8c0] sm:$0xff]
    %v413 = vld [vmem:[#allocation2 + $0x8c8] sm:$0xff]
    %v414 = vld [vmem:[#allocation2 + $0x8d0] sm:$0xff]
    %v415 = vld [vmem:[#allocation2 + $0x8d8] sm:$0xff]
    %v416 = vld [vmem:[#allocation2 + $0x8e0] sm:$0xff]
    %v417 = vld [vmem:[#allocation2 + $0x8e8] sm:$0xff]
    %v418 = vld [vmem:[#allocation2 + $0x8f0] sm:$0xff]
    %v419 = vld [vmem:[#allocation2 + $0x8f8] sm:$0xff]
    %v420 = vld [vmem:[#allocation2 + $0x900] sm:$0xff]
    %v421 = vld [vmem:[#allocation2 + $0x908] sm:$0xff]
    %v422 = vld [vmem:[#allocation2 + $0x910] sm:$0xff]
    %v423 = vld [vmem:[#allocation2 + $0x918] sm:$0xff]
    %v424 = vld [vmem:[#allocation2 + $0x920] sm:$0xff]
    %v425 = vld [vmem:[#allocation2 + $0x928] sm:$0xff]
    %v426 = vld [vmem:[#allocation2 + $0x930] sm:$0xff]
    %v427 = vld [vmem:[#allocation2 + $0x938] sm:$0xff]
    %v428 = vld [vmem:[#allocation2 + $0x940] sm:$0xff]
    %v429 = vld [vmem:[#allocation2 + $0x948] sm:$0xff]
    %v430 = vld [vmem:[#allocation2 + $0x950] sm:$0xff]
    %v431 = vld [vmem:[#allocation2 + $0x958] sm:$0xff]
    %v432 = vld [vmem:[#allocation2 + $0x960] sm:$0xff]
    %v433 = vld [vmem:[#allocation2 + $0x968] sm:$0xff]
    %v434 = vld [vmem:[#allocation2 + $0x970] sm:$0xff]
    %v435 = vld [vmem:[#allocation2 + $0x978] sm:$0xff]
    %v436 = vld [vmem:[#allocation2 + $0x980] sm:$0xff]
    %v437 = vld [vmem:[#allocation2 + $0x988] sm:$0xff]
    %v438 = vld [vmem:[#allocation2 + $0x990] sm:$0xff]
    %v439 = vld [vmem:[#allocation2 + $0x998] sm:$0xff]
    %v440 = vld [vmem:[#allocation2 + $0x9a0] sm:$0xff]
    %v441 = vld [vmem:[#allocation2 + $0x9a8] sm:$0xff]
    %v442 = vld [vmem:[#allocation2 + $0x9b0] sm:$0xff]
    %v443 = vld [vmem:[#allocation2 + $0x9b8] sm:$0xff]
    %v444 = vld [vmem:[#allocation2 + $0x9c0] sm:$0xff]
    %v445 = vld [vmem:[#allocation2 + $0x9c8] sm:$0xff]
    %v446 = vld [vmem:[#allocation2 + $0x9d0] sm:$0xff]
    %v447 = vld [vmem:[#allocation2 + $0x9d8] sm:$0xff]
    %v448 = vld [vmem:[#allocation2 + $0x9e0] sm:$0xff]
    %v449 = vld [vmem:[#allocation2 + $0x9e8] sm:$0xff]
    %v450 = vld [vmem:[#allocation2 + $0x9f0] sm:$0xff]
    %v451 = vld [vmem:[#allocation2 + $0x9f8] sm:$0xff]
    %v452 = vld [vmem:[#allocation2 + $0xa00] sm:$0xff]
    %v453 = vld [vmem:[#allocation2 + $0xa08] sm:$0xff]
    %v454 = vld [vmem:[#allocation2 + $0xa10] sm:$0xff]
    %v455 = vld [vmem:[#allocation2 + $0xa18] sm:$0xff]
    %v456 = vld [vmem:[#allocation2 + $0xa20] sm:$0xff]
    %v457 = vld [vmem:[#allocation2 + $0xa28] sm:$0xff]
    %v458 = vld [vmem:[#allocation2 + $0xa30] sm:$0xff]
    %v459 = vld [vmem:[#allocation2 + $0xa38] sm:$0xff]
    %v460 = vld [vmem:[#allocation2 + $0xa40] sm:$0xff]
    %v461 = vld [vmem:[#allocation2 + $0xa48] sm:$0xff]
    %v462 = vld [vmem:[#allocation2 + $0xa50] sm:$0xff]
    %v463 = vld [vmem:[#allocation2 + $0xa58] sm:$0xff]
    %v464 = vld [vmem:[#allocation2 + $0xa60] sm:$0xff]
    %v465 = vld [vmem:[#allocation2 + $0xa68] sm:$0xff]
    %v466 = vld [vmem:[#allocation2 + $0xa70] sm:$0xff]
    %v467 = vld [vmem:[#allocation2 + $0xa78] sm:$0xff]
    %v468 = vld [vmem:[#allocation2 + $0xa80] sm:$0xff]
    %v469 = vld [vmem:[#allocation2 + $0xa88] sm:$0xff]
    %v470 = vld [vmem:[#allocation2 + $0xa90] sm:$0xff]
    %v471 = vld [vmem:[#allocation2 + $0xa98] sm:$0xff]
    %v472 = vld [vmem:[#allocation2 + $0xaa0] sm:$0xff]
    %v473 = vld [vmem:[#allocation2 + $0xaa8] sm:$0xff]
    %v474 = vld [vmem:[#allocation2 + $0xab0] sm:$0xff]
    %v475 = vld [vmem:[#allocation2 + $0xab8] sm:$0xff]
    %v476 = vld [vmem:[#allocation2 + $0xac0] sm:$0xff]
    %v477 = vld [vmem:[#allocation2 + $0xac8] sm:$0xff]
    %v478 = vld [vmem:[#allocation2 + $0xad0] sm:$0xff]
    %v479 = vld [vmem:[#allocation2 + $0xad8] sm:$0xff]
    %v480 = vld [vmem:[#allocation2 + $0xae0] sm:$0xff]
    %v481 = vld [vmem:[#allocation2 + $0xae8] sm:$0xff]
    %v482 = vld [vmem:[#allocation4] sm:$0xf]
    %v484 = vlaneseq
    %v485 = vshrl.u32 %v484, 7
    %v486 = vsub.s32 0, %v485
    %v487 = vrot.slane %v482, %v486
    %v488 = vlaneseq
    %v489 = vshrl.u32 %v488, 7
    %v490 = vsub.s32 1, %v489
    %v491 = vrot.slane %v482, %v490
    %v492 = vlaneseq
    %v493 = vshrl.u32 %v492, 7
    %v494 = vsub.s32 2, %v493
    %v495 = vrot.slane %v482, %v494
    %v496 = vlaneseq
    %v497 = vshrl.u32 %v496, 7
    %v498 = vsub.s32 3, %v497
    %v499 = vrot.slane %v482, %v498
    %v516 = vunpack.c.l.b16 %v120
    %v517 = vunpack.c.h.b16 %v120
    %v518 = vunpack.c.l.b16 %v121
    %v519 = vunpack.c.h.b16 %v121
    %v520 = vunpack.c.l.b16 %v122
    %v521 = vunpack.c.h.b16 %v122
    %v522 = vunpack.c.l.b16 %v123
    %v523 = vunpack.c.h.b16 %v123
    %v524 = vunpack.c.l.b16 %v124
    %v525 = vunpack.c.h.b16 %v124
    %v526 = vunpack.c.l.b16 %v125
    %v527 = vunpack.c.l.b16 %v126
    %v528 = vunpack.c.h.b16 %v126
    %v529 = vunpack.c.l.b16 %v127
    %v530 = vunpack.c.h.b16 %v127
    %v531 = vunpack.c.l.b16 %v128
    %v532 = vunpack.c.h.b16 %v128
    %v533 = vunpack.c.l.b16 %v129
    %v534 = vunpack.c.h.b16 %v129
    %v535 = vunpack.c.l.b16 %v130
    %v536 = vunpack.c.h.b16 %v130
    %v537 = vunpack.c.l.b16 %v131
    %v538 = vpack.c.b16 %v527, %v516
    %v539 = vpack.c.b16 %v528, %v517
    %v540 = vpack.c.b16 %v529, %v518
    %v541 = vpack.c.b16 %v530, %v519
    %v542 = vpack.c.b16 %v531, %v520
    %v543 = vpack.c.b16 %v532, %v521
    %v544 = vpack.c.b16 %v533, %v522
    %v545 = vpack.c.b16 %v534, %v523
    %v546 = vpack.c.b16 %v535, %v524
    %v547 = vpack.c.b16 %v536, %v525
    %v548 = vpack.c.b16 %v537, %v526
    %v909 = vunpack.c.l.b16 %v132
    %v910 = vunpack.c.h.b16 %v132
    %v911 = vunpack.c.l.b16 %v133
    %v912 = vunpack.c.h.b16 %v133
    %v913 = vunpack.c.l.b16 %v134
    %v914 = vunpack.c.h.b16 %v134
    %v915 = vunpack.c.l.b16 %v135
    %v916 = vunpack.c.h.b16 %v135
    %v917 = vunpack.c.l.b16 %v136
    %v918 = vunpack.c.h.b16 %v136
    %v919 = vunpack.c.l.b16 %v137
    %v920 = vunpack.c.h.b16 %v137
    %v921 = vunpack.c.l.b16 %v138
    %v922 = vunpack.c.h.b16 %v138
    %v923 = vunpack.c.l.b16 %v139
    %v924 = vunpack.c.h.b16 %v139
    %v925 = vunpack.c.l.b16 %v140
    %v926 = vunpack.c.h.b16 %v140
    %v927 = vunpack.c.l.b16 %v141
    %v928 = vunpack.c.h.b16 %v141
    %v929 = vunpack.c.l.b16 %v142
    %v930 = vunpack.c.h.b16 %v142
    %v931 = vunpack.c.l.b16 %v143
    %v932 = vunpack.c.h.b16 %v143
    %v933 = vunpack.c.l.b16 %v144
    %v934 = vunpack.c.h.b16 %v144
    %v935 = vunpack.c.l.b16 %v145
    %v936 = vunpack.c.h.b16 %v145
    %v937 = vunpack.c.l.b16 %v146
    %v938 = vunpack.c.h.b16 %v146
    %v939 = vunpack.c.l.b16 %v147
    %v940 = vunpack.c.h.b16 %v147
    %v941 = vunpack.c.l.b16 %v148
    %v942 = vunpack.c.h.b16 %v148
    %v943 = vunpack.c.l.b16 %v149
    %v944 = vunpack.c.h.b16 %v149
    %v945 = vunpack.c.l.b16 %v150
    %v946 = vunpack.c.h.b16 %v150
    %v947 = vunpack.c.l.b16 %v151
    %v948 = vunpack.c.h.b16 %v151
    %v949 = vunpack.c.l.b16 %v152
    %v950 = vunpack.c.h.b16 %v152
    %v951 = vunpack.c.l.b16 %v153
    %v952 = vunpack.c.h.b16 %v153
    %v953 = vunpack.c.l.b16 %v154
    %v954 = vunpack.c.h.b16 %v154
    %v955 = vunpack.c.l.b16 %v155
    %v956 = vunpack.c.h.b16 %v155
    %v957 = vunpack.c.l.b16 %v156
    %v958 = vunpack.c.h.b16 %v156
    %v959 = vunpack.c.l.b16 %v157
    %v960 = vunpack.c.h.b16 %v157
    %v961 = vunpack.c.l.b16 %v158
    %v962 = vunpack.c.h.b16 %v158
    %v963 = vunpack.c.l.b16 %v159
    %v964 = vunpack.c.h.b16 %v159
    %v965 = vunpack.c.l.b16 %v160
    %v966 = vunpack.c.h.b16 %v160
    %v967 = vunpack.c.l.b16 %v161
    %v968 = vunpack.c.h.b16 %v161
    %v969 = vunpack.c.l.b16 %v162
    %v970 = vunpack.c.h.b16 %v162
    %v971 = vunpack.c.l.b16 %v163
    %v972 = vunpack.c.h.b16 %v163
    %v973 = vunpack.c.l.b16 %v164
    %v974 = vunpack.c.h.b16 %v164
    %v975 = vunpack.c.l.b16 %v165
    %v976 = vunpack.c.h.b16 %v165
    %v977 = vunpack.c.l.b16 %v166
    %v978 = vunpack.c.h.b16 %v166
    %v979 = vunpack.c.l.b16 %v167
    %v980 = vunpack.c.h.b16 %v167
    %v981 = vunpack.c.l.b16 %v168
    %v982 = vunpack.c.h.b16 %v168
    %v983 = vunpack.c.l.b16 %v169
    %v984 = vunpack.c.h.b16 %v169
    %v985 = vunpack.c.l.b16 %v170
    %v986 = vunpack.c.h.b16 %v170
    %v987 = vunpack.c.l.b16 %v171
    %v988 = vunpack.c.h.b16 %v171
    %v989 = vunpack.c.l.b16 %v172
    %v990 = vunpack.c.h.b16 %v172
    %v991 = vunpack.c.l.b16 %v173
    %v992 = vunpack.c.h.b16 %v173
    %v993 = vunpack.c.l.b16 %v174
    %v994 = vunpack.c.h.b16 %v174
    %v995 = vunpack.c.l.b16 %v175
    %v996 = vunpack.c.h.b16 %v175
    %v997 = vunpack.c.l.b16 %v176
    %v998 = vunpack.c.h.b16 %v176
    %v999 = vunpack.c.l.b16 %v177
    %v1000 = vunpack.c.h.b16 %v177
    %v1001 = vunpack.c.l.b16 %v178
    %v1002 = vunpack.c.h.b16 %v178
    %v1003 = vunpack.c.l.b16 %v179
    %v1004 = vunpack.c.h.b16 %v179
    %v1005 = vunpack.c.l.b16 %v180
    %v1006 = vunpack.c.h.b16 %v180
    %v1007 = vunpack.c.l.b16 %v181
    %v1008 = vunpack.c.h.b16 %v181
    %v1009 = vunpack.c.l.b16 %v182
    %v1010 = vunpack.c.h.b16 %v182
    %v1011 = vunpack.c.l.b16 %v183
    %v1012 = vunpack.c.h.b16 %v183
    %v1013 = vunpack.c.l.b16 %v184
    %v1014 = vunpack.c.h.b16 %v184
    %v1015 = vunpack.c.l.b16 %v185
    %v1016 = vunpack.c.h.b16 %v185
    %v1017 = vunpack.c.l.b16 %v186
    %v1018 = vunpack.c.h.b16 %v186
    %v1019 = vunpack.c.l.b16 %v187
    %v1020 = vunpack.c.h.b16 %v187
    %v1021 = vunpack.c.l.b16 %v188
    %v1022 = vunpack.c.h.b16 %v188
    %v1023 = vunpack.c.l.b16 %v189
    %v1024 = vunpack.c.h.b16 %v189
    %v1025 = vunpack.c.l.b16 %v190
    %v1026 = vunpack.c.h.b16 %v190
    %v1027 = vunpack.c.l.b16 %v191
    %v1028 = vunpack.c.h.b16 %v191
    %v1029 = vunpack.c.l.b16 %v192
    %v1030 = vunpack.c.h.b16 %v192
    %v1031 = vunpack.c.l.b16 %v193
    %v1032 = vunpack.c.h.b16 %v193
    %v1033 = vunpack.c.l.b16 %v194
    %v1034 = vunpack.c.h.b16 %v194
    %v1035 = vunpack.c.l.b16 %v195
    %v1036 = vunpack.c.h.b16 %v195
    %v1037 = vunpack.c.l.b16 %v196
    %v1038 = vunpack.c.h.b16 %v196
    %v1039 = vunpack.c.l.b16 %v197
    %v1040 = vunpack.c.h.b16 %v197
    %v1041 = vunpack.c.l.b16 %v198
    %v1042 = vunpack.c.h.b16 %v198
    %v1043 = vunpack.c.l.b16 %v199
    %v1044 = vunpack.c.h.b16 %v199
    %v1045 = vunpack.c.l.b16 %v200
    %v1046 = vunpack.c.h.b16 %v200
    %v1047 = vunpack.c.l.b16 %v201
    %v1048 = vunpack.c.h.b16 %v201
    %v1049 = vunpack.c.l.b16 %v202
    %v1050 = vunpack.c.h.b16 %v202
    %v1051 = vunpack.c.l.b16 %v203
    %v1052 = vunpack.c.h.b16 %v203
    %v1053 = vunpack.c.l.b16 %v204
    %v1054 = vunpack.c.h.b16 %v204
    %v1055 = vunpack.c.l.b16 %v205
    %v1056 = vunpack.c.h.b16 %v205
    %v1057 = vunpack.c.l.b16 %v206
    %v1058 = vunpack.c.h.b16 %v206
    %v1059 = vunpack.c.l.b16 %v207
    %v1060 = vunpack.c.h.b16 %v207
    %v1061 = vunpack.c.l.b16 %v208
    %v1062 = vunpack.c.h.b16 %v208
    %v1063 = vunpack.c.l.b16 %v209
    %v1064 = vunpack.c.h.b16 %v209
    %v1065 = vunpack.c.l.b16 %v210
    %v1066 = vunpack.c.h.b16 %v210
    %v1067 = vunpack.c.l.b16 %v211
    %v1068 = vunpack.c.h.b16 %v211
    %v1069 = vunpack.c.l.b16 %v212
    %v1070 = vunpack.c.h.b16 %v212
    %v1071 = vunpack.c.l.b16 %v213
    %v1072 = vunpack.c.h.b16 %v213
    %v1073 = vunpack.c.l.b16 %v214
    %v1074 = vunpack.c.h.b16 %v214
    %v1075 = vunpack.c.l.b16 %v215
    %v1076 = vunpack.c.h.b16 %v215
    %v1077 = vunpack.c.l.b16 %v216
    %v1078 = vunpack.c.h.b16 %v216
    %v1079 = vunpack.c.l.b16 %v217
    %v1080 = vunpack.c.h.b16 %v217
    %v1081 = vunpack.c.l.b16 %v218
    %v1082 = vunpack.c.h.b16 %v218
    %v1083 = vunpack.c.l.b16 %v219
    %v1084 = vunpack.c.h.b16 %v219
    %v1085 = vunpack.c.l.b16 %v220
    %v1086 = vunpack.c.h.b16 %v220
    %v1087 = vunpack.c.l.b16 %v221
    %v1088 = vunpack.c.h.b16 %v221
    %v1089 = vunpack.c.l.b16 %v222
    %v1090 = vunpack.c.h.b16 %v222
    %v1091 = vunpack.c.l.b16 %v223
    %v1092 = vunpack.c.h.b16 %v223
    %v1093 = vunpack.c.l.b16 %v224
    %v1094 = vunpack.c.h.b16 %v224
    %v1095 = vunpack.c.l.b16 %v225
    %v1096 = vunpack.c.h.b16 %v225
    %v1097 = vunpack.c.l.b16 %v226
    %v1098 = vunpack.c.h.b16 %v226
    %v1099 = vunpack.c.l.b16 %v227
    %v1100 = vunpack.c.h.b16 %v227
    %v1101 = vunpack.c.l.b16 %v228
    %v1102 = vunpack.c.h.b16 %v228
    %v1103 = vunpack.c.l.b16 %v229
    %v1104 = vunpack.c.h.b16 %v229
    %v1105 = vunpack.c.l.b16 %v230
    %v1106 = vunpack.c.h.b16 %v230
    %v1107 = vunpack.c.l.b16 %v231
    %v1108 = vunpack.c.h.b16 %v231
    %v1109 = vunpack.c.l.b16 %v232
    %v1110 = vunpack.c.h.b16 %v232
    %v1111 = vunpack.c.l.b16 %v233
    %v1112 = vunpack.c.h.b16 %v233
    %v1113 = vunpack.c.l.b16 %v234
    %v1114 = vunpack.c.h.b16 %v234
    %v1115 = vunpack.c.l.b16 %v235
    %v1116 = vunpack.c.h.b16 %v235
    %v1117 = vunpack.c.l.b16 %v236
    %v1118 = vunpack.c.h.b16 %v236
    %v1119 = vunpack.c.l.b16 %v237
    %v1120 = vunpack.c.h.b16 %v237
    %v1121 = vunpack.c.l.b16 %v238
    %v1122 = vunpack.c.h.b16 %v238
    %v1123 = vunpack.c.l.b16 %v239
    %v1124 = vunpack.c.h.b16 %v239
    %v1125 = vunpack.c.l.b16 %v240
    %v1126 = vunpack.c.h.b16 %v240
    %v1127 = vunpack.c.l.b16 %v241
    %v1128 = vunpack.c.h.b16 %v241
    %v1129 = vunpack.c.l.b16 %v242
    %v1130 = vunpack.c.h.b16 %v242
    %v1131 = vunpack.c.l.b16 %v243
    %v1132 = vunpack.c.h.b16 %v243
    %v1133 = vunpack.c.l.b16 %v244
    %v1134 = vunpack.c.h.b16 %v244
    %v1135 = vunpack.c.l.b16 %v245
    %v1136 = vunpack.c.h.b16 %v245
    %v1137 = vunpack.c.l.b16 %v246
    %v1138 = vunpack.c.h.b16 %v246
    %v1139 = vunpack.c.l.b16 %v247
    %v1140 = vunpack.c.h.b16 %v247
    %v1141 = vunpack.c.l.b16 %v248
    %v1142 = vunpack.c.h.b16 %v248
    %v1143 = vunpack.c.l.b16 %v249
    %v1144 = vunpack.c.h.b16 %v249
    %v1145 = vunpack.c.l.b16 %v250
    %v1146 = vunpack.c.h.b16 %v250
    %v1147 = vunpack.c.l.b16 %v251
    %v1148 = vunpack.c.h.b16 %v251
    %v1149 = vunpack.c.l.b16 %v252
    %v1150 = vunpack.c.h.b16 %v252
    %v1151 = vunpack.c.l.b16 %v253
    %v1152 = vunpack.c.h.b16 %v253
    %v1153 = vunpack.c.l.b16 %v254
    %v1154 = vunpack.c.h.b16 %v254
    %v1155 = vunpack.c.l.b16 %v255
    %v1156 = vunpack.c.h.b16 %v255
    %v1157 = vunpack.c.l.b16 %v256
    %v1158 = vunpack.c.h.b16 %v256
    %v1159 = vunpack.c.l.b16 %v257
    %v1160 = vunpack.c.h.b16 %v257
    %v1161 = vunpack.c.l.b16 %v258
    %v1162 = vunpack.c.h.b16 %v258
    %v1163 = vunpack.c.l.b16 %v259
    %v1164 = vunpack.c.h.b16 %v259
    %v1165 = vunpack.c.l.b16 %v260
    %v1166 = vunpack.c.h.b16 %v260
    %v1167 = vunpack.c.l.b16 %v261
    %v1168 = vunpack.c.h.b16 %v261
    %v1169 = vunpack.c.l.b16 %v262
    %v1170 = vunpack.c.h.b16 %v262
    %v1171 = vunpack.c.l.b16 %v263
    %v1172 = vunpack.c.h.b16 %v263
    %v1173 = vunpack.c.l.b16 %v264
    %v1174 = vunpack.c.h.b16 %v264
    %v1175 = vunpack.c.l.b16 %v265
    %v1176 = vunpack.c.h.b16 %v265
    %v1177 = vunpack.c.l.b16 %v266
    %v1178 = vunpack.c.h.b16 %v266
    %v1179 = vunpack.c.l.b16 %v267
    %v1180 = vunpack.c.h.b16 %v267
    %v1181 = vunpack.c.l.b16 %v268
    %v1182 = vunpack.c.h.b16 %v268
    %v1183 = vunpack.c.l.b16 %v269
    %v1184 = vunpack.c.h.b16 %v269
    %v1185 = vunpack.c.l.b16 %v270
    %v1186 = vunpack.c.h.b16 %v270
    %v1187 = vunpack.c.l.b16 %v271
    %v1188 = vunpack.c.h.b16 %v271
    %v1189 = vunpack.c.l.b16 %v272
    %v1190 = vunpack.c.h.b16 %v272
    %v1191 = vunpack.c.l.b16 %v273
    %v1192 = vunpack.c.h.b16 %v273
    %v1193 = vunpack.c.l.b16 %v274
    %v1194 = vunpack.c.h.b16 %v274
    %v1195 = vunpack.c.l.b16 %v275
    %v1196 = vunpack.c.h.b16 %v275
    %v1197 = vunpack.c.l.b16 %v276
    %v1198 = vunpack.c.h.b16 %v276
    %v1199 = vunpack.c.l.b16 %v277
    %v1200 = vunpack.c.h.b16 %v277
    %v1201 = vunpack.c.l.b16 %v278
    %v1202 = vunpack.c.h.b16 %v278
    %v1203 = vunpack.c.l.b16 %v279
    %v1204 = vunpack.c.h.b16 %v279
    %v1205 = vunpack.c.l.b16 %v280
    %v1206 = vunpack.c.h.b16 %v280
    %v1207 = vunpack.c.l.b16 %v281
    %v1208 = vunpack.c.h.b16 %v281
    %v1209 = vunpack.c.l.b16 %v282
    %v1210 = vunpack.c.h.b16 %v282
    %v1211 = vunpack.c.l.b16 %v283
    %v1212 = vunpack.c.h.b16 %v283
    %v1213 = vunpack.c.l.b16 %v284
    %v1214 = vunpack.c.h.b16 %v284
    %v1215 = vunpack.c.l.b16 %v285
    %v1216 = vunpack.c.h.b16 %v285
    %v1217 = vunpack.c.l.b16 %v286
    %v1218 = vunpack.c.h.b16 %v286
    %v1219 = vunpack.c.l.b16 %v287
    %v1220 = vunpack.c.h.b16 %v287
    %v1221 = vunpack.c.l.b16 %v288
    %v1222 = vunpack.c.h.b16 %v288
    %v1223 = vunpack.c.l.b16 %v289
    %v1224 = vunpack.c.h.b16 %v289
    %v1225 = vunpack.c.l.b16 %v290
    %v1226 = vunpack.c.h.b16 %v290
    %v1227 = vunpack.c.l.b16 %v291
    %v1228 = vunpack.c.h.b16 %v291
    %v1229 = vunpack.c.l.b16 %v292
    %v1230 = vunpack.c.h.b16 %v292
    %v1231 = vunpack.c.l.b16 %v293
    %v1232 = vunpack.c.h.b16 %v293
    %v1233 = vunpack.c.l.b16 %v294
    %v1234 = vunpack.c.h.b16 %v294
    %v1235 = vunpack.c.l.b16 %v295
    %v1236 = vunpack.c.h.b16 %v295
    %v1237 = vunpack.c.l.b16 %v296
    %v1238 = vunpack.c.h.b16 %v296
    %v1239 = vunpack.c.l.b16 %v297
    %v1240 = vunpack.c.h.b16 %v297
    %v1241 = vunpack.c.l.b16 %v298
    %v1242 = vunpack.c.h.b16 %v298
    %v1243 = vunpack.c.l.b16 %v299
    %v1244 = vunpack.c.h.b16 %v299
    %v1245 = vunpack.c.l.b16 %v300
    %v1246 = vunpack.c.h.b16 %v300
    %v1247 = vunpack.c.l.b16 %v301
    %v1248 = vunpack.c.h.b16 %v301
    %v1249 = vunpack.c.l.b16 %v302
    %v1250 = vunpack.c.h.b16 %v302
    %v1251 = vunpack.c.l.b16 %v303
    %v1252 = vunpack.c.h.b16 %v303
    %v1253 = vunpack.c.l.b16 %v304
    %v1254 = vunpack.c.h.b16 %v304
    %v1255 = vunpack.c.l.b16 %v305
    %v1256 = vunpack.c.h.b16 %v305
    %v1257 = vunpack.c.l.b16 %v306
    %v1258 = vunpack.c.h.b16 %v306
    %v1259 = vunpack.c.l.b16 %v307
    %v1260 = vunpack.c.h.b16 %v307
    %v1261 = vunpack.c.l.b16 %v308
    %v1262 = vunpack.c.h.b16 %v308
    %v1263 = vunpack.c.l.b16 %v309
    %v1264 = vunpack.c.h.b16 %v309
    %v1265 = vunpack.c.l.b16 %v310
    %v1266 = vunpack.c.h.b16 %v310
    %v1267 = vunpack.c.l.b16 %v311
    %v1268 = vunpack.c.h.b16 %v311
    %v1269 = vunpack.c.l.b16 %v312
    %v1270 = vunpack.c.h.b16 %v312
    %v1271 = vunpack.c.l.b16 %v313
    %v1272 = vunpack.c.h.b16 %v313
    %v1273 = vunpack.c.l.b16 %v314
    %v1274 = vunpack.c.h.b16 %v314
    %v1275 = vunpack.c.l.b16 %v315
    %v1276 = vunpack.c.h.b16 %v315
    %v1277 = vunpack.c.l.b16 %v316
    %v1278 = vunpack.c.h.b16 %v316
    %v1279 = vunpack.c.l.b16 %v317
    %v1280 = vunpack.c.h.b16 %v317
    %v1281 = vunpack.c.l.b16 %v318
    %v1282 = vunpack.c.h.b16 %v318
    %v1283 = vunpack.c.l.b16 %v319
    %v1284 = vunpack.c.h.b16 %v319
    %v1285 = vunpack.c.l.b16 %v320
    %v1286 = vunpack.c.h.b16 %v320
    %v1287 = vunpack.c.l.b16 %v321
    %v1288 = vunpack.c.h.b16 %v321
    %v1289 = vunpack.c.l.b16 %v322
    %v1290 = vunpack.c.h.b16 %v322
    %v1291 = vunpack.c.l.b16 %v323
    %v1292 = vunpack.c.h.b16 %v323
    %v1293 = vunpack.c.l.b16 %v324
    %v1294 = vunpack.c.h.b16 %v324
    %v1295 = vunpack.c.l.b16 %v325
    %v1296 = vunpack.c.h.b16 %v325
    %v1297 = vunpack.c.l.b16 %v326
    %v1298 = vunpack.c.h.b16 %v326
    %v1299 = vunpack.c.l.b16 %v327
    %v1300 = vunpack.c.h.b16 %v327
    %v1301 = vunpack.c.l.b16 %v328
    %v1302 = vunpack.c.h.b16 %v328
    %v1303 = vunpack.c.l.b16 %v329
    %v1304 = vunpack.c.h.b16 %v329
    %v1305 = vunpack.c.l.b16 %v330
    %v1306 = vunpack.c.h.b16 %v330
    %v1307 = vunpack.c.l.b16 %v331
    %v1308 = vunpack.c.h.b16 %v331
    %v1309 = vunpack.c.l.b16 %v332
    %v1310 = vunpack.c.h.b16 %v332
    %v1311 = vunpack.c.l.b16 %v333
    %v1312 = vunpack.c.h.b16 %v333
    %v1313 = vunpack.c.l.b16 %v334
    %v1314 = vunpack.c.h.b16 %v334
    %v1315 = vunpack.c.l.b16 %v335
    %v1316 = vunpack.c.h.b16 %v335
    %v1317 = vunpack.c.l.b16 %v336
    %v1318 = vunpack.c.h.b16 %v336
    %v1319 = vunpack.c.l.b16 %v337
    %v1320 = vunpack.c.h.b16 %v337
    %v1321 = vunpack.c.l.b16 %v338
    %v1322 = vunpack.c.h.b16 %v338
    %v1323 = vunpack.c.l.b16 %v339
    %v1324 = vunpack.c.h.b16 %v339
    %v1325 = vunpack.c.l.b16 %v340
    %v1326 = vunpack.c.h.b16 %v340
    %v1327 = vunpack.c.l.b16 %v341
    %v1328 = vunpack.c.h.b16 %v341
    %v1329 = vunpack.c.l.b16 %v342
    %v1330 = vunpack.c.h.b16 %v342
    %v1331 = vunpack.c.l.b16 %v343
    %v1332 = vunpack.c.h.b16 %v343
    %v1333 = vunpack.c.l.b16 %v344
    %v1334 = vunpack.c.h.b16 %v344
    %v1335 = vunpack.c.l.b16 %v345
    %v1336 = vunpack.c.h.b16 %v345
    %v1337 = vunpack.c.l.b16 %v346
    %v1338 = vunpack.c.h.b16 %v346
    %v1339 = vunpack.c.l.b16 %v347
    %v1340 = vunpack.c.h.b16 %v347
    %v1341 = vunpack.c.l.b16 %v348
    %v1342 = vunpack.c.h.b16 %v348
    %v1343 = vunpack.c.l.b16 %v349
    %v1344 = vunpack.c.h.b16 %v349
    %v1345 = vunpack.c.l.b16 %v350
    %v1346 = vunpack.c.h.b16 %v350
    %v1347 = vunpack.c.l.b16 %v351
    %v1348 = vunpack.c.h.b16 %v351
    %v1349 = vunpack.c.l.b16 %v352
    %v1350 = vunpack.c.h.b16 %v352
    %v1351 = vunpack.c.l.b16 %v353
    %v1352 = vunpack.c.h.b16 %v353
    %v1353 = vunpack.c.l.b16 %v354
    %v1354 = vunpack.c.h.b16 %v354
    %v1355 = vunpack.c.l.b16 %v355
    %v1356 = vunpack.c.h.b16 %v355
    %v1357 = vunpack.c.l.b16 %v356
    %v1358 = vunpack.c.h.b16 %v356
    %v1359 = vunpack.c.l.b16 %v357
    %v1360 = vunpack.c.h.b16 %v357
    %v1361 = vunpack.c.l.b16 %v358
    %v1362 = vunpack.c.h.b16 %v358
    %v1363 = vunpack.c.l.b16 %v359
    %v1364 = vunpack.c.h.b16 %v359
    %v1365 = vunpack.c.l.b16 %v360
    %v1366 = vunpack.c.h.b16 %v360
    %v1367 = vunpack.c.l.b16 %v361
    %v1368 = vunpack.c.h.b16 %v361
    %v1369 = vunpack.c.l.b16 %v362
    %v1370 = vunpack.c.h.b16 %v362
    %v1371 = vunpack.c.l.b16 %v363
    %v1372 = vunpack.c.h.b16 %v363
    %v1373 = vunpack.c.l.b16 %v364
    %v1374 = vunpack.c.h.b16 %v364
    %v1375 = vunpack.c.l.b16 %v365
    %v1376 = vunpack.c.h.b16 %v365
    %v1377 = vunpack.c.l.b16 %v366
    %v1378 = vunpack.c.h.b16 %v366
    %v1379 = vunpack.c.l.b16 %v367
    %v1380 = vunpack.c.h.b16 %v367
    %v1381 = vunpack.c.l.b16 %v368
    %v1382 = vunpack.c.h.b16 %v368
    %v1383 = vunpack.c.l.b16 %v369
    %v1384 = vunpack.c.h.b16 %v369
    %v1385 = vunpack.c.l.b16 %v370
    %v1386 = vunpack.c.h.b16 %v370
    %v1387 = vunpack.c.l.b16 %v371
    %v1388 = vunpack.c.h.b16 %v371
    %v1389 = vunpack.c.l.b16 %v372
    %v1390 = vunpack.c.h.b16 %v372
    %v1391 = vunpack.c.l.b16 %v373
    %v1392 = vunpack.c.h.b16 %v373
    %v1393 = vunpack.c.l.b16 %v374
    %v1394 = vunpack.c.h.b16 %v374
    %v1395 = vunpack.c.l.b16 %v375
    %v1396 = vunpack.c.h.b16 %v375
    %v1397 = vunpack.c.l.b16 %v376
    %v1398 = vunpack.c.h.b16 %v376
    %v1399 = vunpack.c.l.b16 %v377
    %v1400 = vunpack.c.h.b16 %v377
    %v1401 = vunpack.c.l.b16 %v378
    %v1402 = vunpack.c.h.b16 %v378
    %v1403 = vunpack.c.l.b16 %v379
    %v1404 = vunpack.c.h.b16 %v379
    %v1405 = vunpack.c.l.b16 %v380
    %v1406 = vunpack.c.h.b16 %v380
    %v1407 = vunpack.c.l.b16 %v381
    %v1408 = vunpack.c.h.b16 %v381
    %v1409 = vunpack.c.l.b16 %v382
    %v1410 = vunpack.c.h.b16 %v382
    %v1411 = vunpack.c.l.b16 %v383
    %v1412 = vunpack.c.h.b16 %v383
    %v1413 = vunpack.c.l.b16 %v384
    %v1414 = vunpack.c.h.b16 %v384
    %v1415 = vunpack.c.l.b16 %v385
    %v1416 = vunpack.c.h.b16 %v385
    %v1417 = vunpack.c.l.b16 %v386
    %v1418 = vunpack.c.h.b16 %v386
    %v1419 = vunpack.c.l.b16 %v387
    %v1420 = vunpack.c.h.b16 %v387
    %v1421 = vunpack.c.l.b16 %v388
    %v1422 = vunpack.c.h.b16 %v388
    %v1423 = vunpack.c.l.b16 %v389
    %v1424 = vunpack.c.h.b16 %v389
    %v1425 = vunpack.c.l.b16 %v390
    %v1426 = vunpack.c.h.b16 %v390
    %v1427 = vunpack.c.l.b16 %v391
    %v1428 = vunpack.c.h.b16 %v391
    %v1429 = vunpack.c.l.b16 %v392
    %v1430 = vunpack.c.h.b16 %v392
    %v1431 = vunpack.c.l.b16 %v393
    %v1432 = vunpack.c.h.b16 %v393
    %v1433 = vunpack.c.l.b16 %v394
    %v1434 = vunpack.c.h.b16 %v394
    %v1435 = vunpack.c.l.b16 %v395
    %v1436 = vunpack.c.h.b16 %v395
    %v1437 = vunpack.c.l.b16 %v396
    %v1438 = vunpack.c.h.b16 %v396
    %v1439 = vunpack.c.l.b16 %v397
    %v1440 = vunpack.c.h.b16 %v397
    %v1441 = vunpack.c.l.b16 %v398
    %v1442 = vunpack.c.h.b16 %v398
    %v1443 = vunpack.c.l.b16 %v399
    %v1444 = vunpack.c.h.b16 %v399
    %v1445 = vunpack.c.l.b16 %v400
    %v1446 = vunpack.c.h.b16 %v400
    %v1447 = vunpack.c.l.b16 %v401
    %v1448 = vunpack.c.h.b16 %v401
    %v1449 = vunpack.c.l.b16 %v402
    %v1450 = vunpack.c.h.b16 %v402
    %v1451 = vunpack.c.l.b16 %v403
    %v1452 = vunpack.c.h.b16 %v403
    %v1453 = vunpack.c.l.b16 %v404
    %v1454 = vunpack.c.h.b16 %v404
    %v1455 = vunpack.c.l.b16 %v405
    %v1456 = vunpack.c.h.b16 %v405
    %v1457 = vunpack.c.l.b16 %v406
    %v1458 = vunpack.c.h.b16 %v406
    %v1459 = vunpack.c.l.b16 %v407
    %v1460 = vunpack.c.h.b16 %v407
    %v1461 = vunpack.c.l.b16 %v408
    %v1462 = vunpack.c.h.b16 %v408
    %v1463 = vunpack.c.l.b16 %v409
    %v1464 = vunpack.c.h.b16 %v409
    %v1465 = vunpack.c.l.b16 %v410
    %v1466 = vunpack.c.h.b16 %v410
    %v1467 = vunpack.c.l.b16 %v411
    %v1468 = vunpack.c.h.b16 %v411
    %v1469 = vunpack.c.l.b16 %v412
    %v1470 = vunpack.c.h.b16 %v412
    %v1471 = vunpack.c.l.b16 %v413
    %v1472 = vunpack.c.h.b16 %v413
    %v1473 = vunpack.c.l.b16 %v414
    %v1474 = vunpack.c.h.b16 %v414
    %v1475 = vunpack.c.l.b16 %v415
    %v1476 = vunpack.c.h.b16 %v415
    %v1477 = vunpack.c.l.b16 %v416
    %v1478 = vunpack.c.h.b16 %v416
    %v1479 = vunpack.c.l.b16 %v417
    %v1480 = vunpack.c.h.b16 %v417
    %v1481 = vunpack.c.l.b16 %v418
    %v1482 = vunpack.c.h.b16 %v418
    %v1483 = vunpack.c.l.b16 %v419
    %v1484 = vunpack.c.h.b16 %v419
    %v1485 = vunpack.c.l.b16 %v420
    %v1486 = vunpack.c.h.b16 %v420
    %v1487 = vunpack.c.l.b16 %v421
    %v1488 = vunpack.c.h.b16 %v421
    %v1489 = vunpack.c.l.b16 %v422
    %v1490 = vunpack.c.h.b16 %v422
    %v1491 = vunpack.c.l.b16 %v423
    %v1492 = vunpack.c.h.b16 %v423
    %v1493 = vunpack.c.l.b16 %v424
    %v1494 = vunpack.c.h.b16 %v424
    %v1495 = vunpack.c.l.b16 %v425
    %v1496 = vunpack.c.h.b16 %v425
    %v1497 = vunpack.c.l.b16 %v426
    %v1498 = vunpack.c.h.b16 %v426
    %v1499 = vunpack.c.l.b16 %v427
    %v1500 = vunpack.c.h.b16 %v427
    %v1501 = vunpack.c.l.b16 %v428
    %v1502 = vunpack.c.h.b16 %v428
    %v1503 = vunpack.c.l.b16 %v429
    %v1504 = vunpack.c.h.b16 %v429
    %v1505 = vunpack.c.l.b16 %v430
    %v1506 = vunpack.c.h.b16 %v430
    %v1507 = vunpack.c.l.b16 %v431
    %v1508 = vunpack.c.h.b16 %v431
    %v1509 = vunpack.c.l.b16 %v432
    %v1510 = vunpack.c.h.b16 %v432
    %v1511 = vunpack.c.l.b16 %v433
    %v1512 = vunpack.c.h.b16 %v433
    %v1513 = vunpack.c.l.b16 %v434
    %v1514 = vunpack.c.h.b16 %v434
    %v1515 = vunpack.c.l.b16 %v435
    %v1516 = vunpack.c.h.b16 %v435
    %v1517 = vunpack.c.l.b16 %v436
    %v1518 = vunpack.c.h.b16 %v436
    %v1519 = vunpack.c.l.b16 %v437
    %v1520 = vunpack.c.h.b16 %v437
    %v1521 = vunpack.c.l.b16 %v438
    %v1522 = vunpack.c.h.b16 %v438
    %v1523 = vunpack.c.l.b16 %v439
    %v1524 = vunpack.c.h.b16 %v439
    %v1525 = vunpack.c.l.b16 %v440
    %v1526 = vunpack.c.h.b16 %v440
    %v1527 = vunpack.c.l.b16 %v441
    %v1528 = vunpack.c.h.b16 %v441
    %v1529 = vunpack.c.l.b16 %v442
    %v1530 = vunpack.c.h.b16 %v442
    %v1531 = vunpack.c.l.b16 %v443
    %v1532 = vunpack.c.h.b16 %v443
    %v1533 = vunpack.c.l.b16 %v444
    %v1534 = vunpack.c.h.b16 %v444
    %v1535 = vunpack.c.l.b16 %v445
    %v1536 = vunpack.c.h.b16 %v445
    %v1537 = vunpack.c.l.b16 %v446
    %v1538 = vunpack.c.h.b16 %v446
    %v1539 = vunpack.c.l.b16 %v447
    %v1540 = vunpack.c.h.b16 %v447
    %v1541 = vunpack.c.l.b16 %v448
    %v1542 = vunpack.c.h.b16 %v448
    %v1543 = vunpack.c.l.b16 %v449
    %v1544 = vunpack.c.h.b16 %v449
    %v1545 = vunpack.c.l.b16 %v450
    %v1546 = vunpack.c.h.b16 %v450
    %v1547 = vunpack.c.l.b16 %v451
    %v1548 = vunpack.c.h.b16 %v451
    %v1549 = vunpack.c.l.b16 %v452
    %v1550 = vunpack.c.h.b16 %v452
    %v1551 = vunpack.c.l.b16 %v453
    %v1552 = vunpack.c.h.b16 %v453
    %v1553 = vunpack.c.l.b16 %v454
    %v1554 = vunpack.c.h.b16 %v454
    %v1555 = vunpack.c.l.b16 %v455
    %v1556 = vunpack.c.h.b16 %v455
    %v1557 = vunpack.c.l.b16 %v456
    %v1558 = vunpack.c.h.b16 %v456
    %v1559 = vunpack.c.l.b16 %v457
    %v1560 = vunpack.c.h.b16 %v457
    %v1561 = vunpack.c.l.b16 %v458
    %v1562 = vunpack.c.h.b16 %v458
    %v1563 = vunpack.c.l.b16 %v459
    %v1564 = vunpack.c.h.b16 %v459
    %v1565 = vunpack.c.l.b16 %v460
    %v1566 = vunpack.c.h.b16 %v460
    %v1567 = vunpack.c.l.b16 %v461
    %v1568 = vunpack.c.h.b16 %v461
    %v1569 = vunpack.c.l.b16 %v462
    %v1570 = vunpack.c.h.b16 %v462
    %v1571 = vunpack.c.l.b16 %v463
    %v1572 = vunpack.c.h.b16 %v463
    %v1573 = vunpack.c.l.b16 %v464
    %v1574 = vunpack.c.h.b16 %v464
    %v1575 = vunpack.c.l.b16 %v465
    %v1576 = vunpack.c.h.b16 %v465
    %v1577 = vunpack.c.l.b16 %v466
    %v1578 = vunpack.c.h.b16 %v466
    %v1579 = vunpack.c.l.b16 %v467
    %v1580 = vunpack.c.h.b16 %v467
    %v1581 = vunpack.c.l.b16 %v468
    %v1582 = vunpack.c.h.b16 %v468
    %v1583 = vunpack.c.l.b16 %v469
    %v1584 = vunpack.c.h.b16 %v469
    %v1585 = vunpack.c.l.b16 %v470
    %v1586 = vunpack.c.h.b16 %v470
    %v1587 = vunpack.c.l.b16 %v471
    %v1588 = vunpack.c.h.b16 %v471
    %v1589 = vunpack.c.l.b16 %v472
    %v1590 = vunpack.c.h.b16 %v472
    %v1591 = vunpack.c.l.b16 %v473
    %v1592 = vunpack.c.h.b16 %v473
    %v1593 = vunpack.c.l.b16 %v474
    %v1594 = vunpack.c.h.b16 %v474
    %v1595 = vunpack.c.l.b16 %v475
    %v1596 = vunpack.c.h.b16 %v475
    %v1597 = vunpack.c.l.b16 %v476
    %v1598 = vunpack.c.h.b16 %v476
    %v1599 = vunpack.c.l.b16 %v477
    %v1600 = vunpack.c.h.b16 %v477
    %v1601 = vunpack.c.l.b16 %v478
    %v1602 = vunpack.c.h.b16 %v478
    %v1603 = vunpack.c.l.b16 %v479
    %v1604 = vunpack.c.h.b16 %v479
    %v1605 = vunpack.c.l.b16 %v480
    %v1606 = vunpack.c.h.b16 %v480
    %v1607 = vunpack.c.l.b16 %v481
    %v1608 = vunpack.c.h.b16 %v481
    %v1609 = vpack.c.b16 %v913, %v909
    %v1610 = vpack.c.b16 %v914, %v910
    %v1611 = vpack.c.b16 %v915, %v911
    %v1612 = vpack.c.b16 %v916, %v912
    %v1613 = vpack.c.b16 %v921, %v917
    %v1614 = vpack.c.b16 %v922, %v918
    %v1615 = vpack.c.b16 %v923, %v919
    %v1616 = vpack.c.b16 %v924, %v920
    %v1617 = vpack.c.b16 %v929, %v925
    %v1618 = vpack.c.b16 %v930, %v926
    %v1619 = vpack.c.b16 %v931, %v927
    %v1620 = vpack.c.b16 %v932, %v928
    %v1621 = vpack.c.b16 %v937, %v933
    %v1622 = vpack.c.b16 %v938, %v934
    %v1623 = vpack.c.b16 %v939, %v935
    %v1624 = vpack.c.b16 %v940, %v936
    %v1625 = vpack.c.b16 %v945, %v941
    %v1626 = vpack.c.b16 %v946, %v942
    %v1627 = vpack.c.b16 %v947, %v943
    %v1628 = vpack.c.b16 %v948, %v944
    %v1629 = vpack.c.b16 %v953, %v949
    %v1630 = vpack.c.b16 %v954, %v950
    %v1631 = vpack.c.b16 %v955, %v951
    %v1632 = vpack.c.b16 %v956, %v952
    %v1633 = vpack.c.b16 %v961, %v957
    %v1634 = vpack.c.b16 %v962, %v958
    %v1635 = vpack.c.b16 %v963, %v959
    %v1636 = vpack.c.b16 %v964, %v960
    %v1637 = vpack.c.b16 %v969, %v965
    %v1638 = vpack.c.b16 %v970, %v966
    %v1639 = vpack.c.b16 %v971, %v967
    %v1640 = vpack.c.b16 %v972, %v968
    %v1641 = vpack.c.b16 %v977, %v973
    %v1642 = vpack.c.b16 %v978, %v974
    %v1643 = vpack.c.b16 %v979, %v975
    %v1644 = vpack.c.b16 %v980, %v976
    %v1645 = vpack.c.b16 %v985, %v981
    %v1646 = vpack.c.b16 %v986, %v982
    %v1647 = vpack.c.b16 %v987, %v983
    %v1648 = vpack.c.b16 %v988, %v984
    %v1649 = vpack.c.b16 %v993, %v989
    %v1650 = vpack.c.b16 %v994, %v990
    %v1651 = vpack.c.b16 %v995, %v991
    %v1652 = vpack.c.b16 %v996, %v992
    %v1653 = vpack.c.b16 %v1001, %v997
    %v1654 = vpack.c.b16 %v1002, %v998
    %v1655 = vpack.c.b16 %v1003, %v999
    %v1656 = vpack.c.b16 %v1004, %v1000
    %v1657 = vpack.c.b16 %v1009, %v1005
    %v1658 = vpack.c.b16 %v1010, %v1006
    %v1659 = vpack.c.b16 %v1011, %v1007
    %v1660 = vpack.c.b16 %v1012, %v1008
    %v1661 = vpack.c.b16 %v1017, %v1013
    %v1662 = vpack.c.b16 %v1018, %v1014
    %v1663 = vpack.c.b16 %v1019, %v1015
    %v1664 = vpack.c.b16 %v1020, %v1016
    %v1665 = vpack.c.b16 %v1025, %v1021
    %v1666 = vpack.c.b16 %v1026, %v1022
    %v1667 = vpack.c.b16 %v1027, %v1023
    %v1668 = vpack.c.b16 %v1028, %v1024
    %v1669 = vpack.c.b16 %v1033, %v1029
    %v1670 = vpack.c.b16 %v1034, %v1030
    %v1671 = vpack.c.b16 %v1035, %v1031
    %v1672 = vpack.c.b16 %v1036, %v1032
    %v1673 = vpack.c.b16 %v1041, %v1037
    %v1674 = vpack.c.b16 %v1042, %v1038
    %v1675 = vpack.c.b16 %v1043, %v1039
    %v1676 = vpack.c.b16 %v1044, %v1040
    %v1677 = vpack.c.b16 %v1049, %v1045
    %v1678 = vpack.c.b16 %v1050, %v1046
    %v1679 = vpack.c.b16 %v1051, %v1047
    %v1680 = vpack.c.b16 %v1052, %v1048
    %v1681 = vpack.c.b16 %v1057, %v1053
    %v1682 = vpack.c.b16 %v1058, %v1054
    %v1683 = vpack.c.b16 %v1059, %v1055
    %v1684 = vpack.c.b16 %v1060, %v1056
    %v1685 = vpack.c.b16 %v1065, %v1061
    %v1686 = vpack.c.b16 %v1066, %v1062
    %v1687 = vpack.c.b16 %v1067, %v1063
    %v1688 = vpack.c.b16 %v1068, %v1064
    %v1689 = vpack.c.b16 %v1073, %v1069
    %v1690 = vpack.c.b16 %v1074, %v1070
    %v1691 = vpack.c.b16 %v1075, %v1071
    %v1692 = vpack.c.b16 %v1076, %v1072
    %v1693 = vpack.c.b16 %v1081, %v1077
    %v1694 = vpack.c.b16 %v1082, %v1078
    %v1695 = vpack.c.b16 %v1083, %v1079
    %v1696 = vpack.c.b16 %v1084, %v1080
    %v1697 = vpack.c.b16 %v1089, %v1085
    %v1698 = vpack.c.b16 %v1090, %v1086
    %v1699 = vpack.c.b16 %v1091, %v1087
    %v1700 = vpack.c.b16 %v1092, %v1088
    %v1701 = vpack.c.b16 %v1097, %v1093
    %v1702 = vpack.c.b16 %v1098, %v1094
    %v1703 = vpack.c.b16 %v1099, %v1095
    %v1704 = vpack.c.b16 %v1100, %v1096
    %v1705 = vpack.c.b16 %v1105, %v1101
    %v1706 = vpack.c.b16 %v1106, %v1102
    %v1707 = vpack.c.b16 %v1107, %v1103
    %v1708 = vpack.c.b16 %v1108, %v1104
    %v1709 = vpack.c.b16 %v1113, %v1109
    %v1710 = vpack.c.b16 %v1114, %v1110
    %v1711 = vpack.c.b16 %v1115, %v1111
    %v1712 = vpack.c.b16 %v1116, %v1112
    %v1713 = vpack.c.b16 %v1121, %v1117
    %v1714 = vpack.c.b16 %v1122, %v1118
    %v1715 = vpack.c.b16 %v1123, %v1119
    %v1716 = vpack.c.b16 %v1124, %v1120
    %v1717 = vpack.c.b16 %v1129, %v1125
    %v1718 = vpack.c.b16 %v1130, %v1126
    %v1719 = vpack.c.b16 %v1131, %v1127
    %v1720 = vpack.c.b16 %v1132, %v1128
    %v1721 = vpack.c.b16 %v1137, %v1133
    %v1722 = vpack.c.b16 %v1138, %v1134
    %v1723 = vpack.c.b16 %v1139, %v1135
    %v1724 = vpack.c.b16 %v1140, %v1136
    %v1725 = vpack.c.b16 %v1145, %v1141
    %v1726 = vpack.c.b16 %v1146, %v1142
    %v1727 = vpack.c.b16 %v1147, %v1143
    %v1728 = vpack.c.b16 %v1148, %v1144
    %v1729 = vpack.c.b16 %v1153, %v1149
    %v1730 = vpack.c.b16 %v1154, %v1150
    %v1731 = vpack.c.b16 %v1155, %v1151
    %v1732 = vpack.c.b16 %v1156, %v1152
    %v1733 = vpack.c.b16 %v1161, %v1157
    %v1734 = vpack.c.b16 %v1162, %v1158
    %v1735 = vpack.c.b16 %v1163, %v1159
    %v1736 = vpack.c.b16 %v1164, %v1160
    %v1737 = vpack.c.b16 %v1169, %v1165
    %v1738 = vpack.c.b16 %v1170, %v1166
    %v1739 = vpack.c.b16 %v1171, %v1167
    %v1740 = vpack.c.b16 %v1172, %v1168
    %v1741 = vpack.c.b16 %v1177, %v1173
    %v1742 = vpack.c.b16 %v1178, %v1174
    %v1743 = vpack.c.b16 %v1179, %v1175
    %v1744 = vpack.c.b16 %v1180, %v1176
    %v1745 = vpack.c.b16 %v1185, %v1181
    %v1746 = vpack.c.b16 %v1186, %v1182
    %v1747 = vpack.c.b16 %v1187, %v1183
    %v1748 = vpack.c.b16 %v1188, %v1184
    %v1749 = vpack.c.b16 %v1193, %v1189
    %v1750 = vpack.c.b16 %v1194, %v1190
    %v1751 = vpack.c.b16 %v1195, %v1191
    %v1752 = vpack.c.b16 %v1196, %v1192
    %v1753 = vpack.c.b16 %v1201, %v1197
    %v1754 = vpack.c.b16 %v1202, %v1198
    %v1755 = vpack.c.b16 %v1203, %v1199
    %v1756 = vpack.c.b16 %v1204, %v1200
    %v1757 = vpack.c.b16 %v1209, %v1205
    %v1758 = vpack.c.b16 %v1210, %v1206
    %v1759 = vpack.c.b16 %v1211, %v1207
    %v1760 = vpack.c.b16 %v1212, %v1208
    %v1761 = vpack.c.b16 %v1217, %v1213
    %v1762 = vpack.c.b16 %v1218, %v1214
    %v1763 = vpack.c.b16 %v1219, %v1215
    %v1764 = vpack.c.b16 %v1220, %v1216
    %v1765 = vpack.c.b16 %v1225, %v1221
    %v1766 = vpack.c.b16 %v1226, %v1222
    %v1767 = vpack.c.b16 %v1227, %v1223
    %v1768 = vpack.c.b16 %v1228, %v1224
    %v1769 = vpack.c.b16 %v1233, %v1229
    %v1770 = vpack.c.b16 %v1234, %v1230
    %v1771 = vpack.c.b16 %v1235, %v1231
    %v1772 = vpack.c.b16 %v1236, %v1232
    %v1773 = vpack.c.b16 %v1241, %v1237
    %v1774 = vpack.c.b16 %v1242, %v1238
    %v1775 = vpack.c.b16 %v1243, %v1239
    %v1776 = vpack.c.b16 %v1244, %v1240
    %v1777 = vpack.c.b16 %v1249, %v1245
    %v1778 = vpack.c.b16 %v1250, %v1246
    %v1779 = vpack.c.b16 %v1251, %v1247
    %v1780 = vpack.c.b16 %v1252, %v1248
    %v1781 = vpack.c.b16 %v1257, %v1253
    %v1782 = vpack.c.b16 %v1258, %v1254
    %v1783 = vpack.c.b16 %v1259, %v1255
    %v1784 = vpack.c.b16 %v1260, %v1256
    %v1785 = vpack.c.b16 %v1265, %v1261
    %v1786 = vpack.c.b16 %v1266, %v1262
    %v1787 = vpack.c.b16 %v1267, %v1263
    %v1788 = vpack.c.b16 %v1268, %v1264
    %v1789 = vpack.c.b16 %v1273, %v1269
    %v1790 = vpack.c.b16 %v1274, %v1270
    %v1791 = vpack.c.b16 %v1275, %v1271
    %v1792 = vpack.c.b16 %v1276, %v1272
    %v1793 = vpack.c.b16 %v1281, %v1277
    %v1794 = vpack.c.b16 %v1282, %v1278
    %v1795 = vpack.c.b16 %v1283, %v1279
    %v1796 = vpack.c.b16 %v1284, %v1280
    %v1797 = vpack.c.b16 %v1289, %v1285
    %v1798 = vpack.c.b16 %v1290, %v1286
    %v1799 = vpack.c.b16 %v1291, %v1287
    %v1800 = vpack.c.b16 %v1292, %v1288
    %v1801 = vpack.c.b16 %v1297, %v1293
    %v1802 = vpack.c.b16 %v1298, %v1294
    %v1803 = vpack.c.b16 %v1299, %v1295
    %v1804 = vpack.c.b16 %v1300, %v1296
    %v1805 = vpack.c.b16 %v1305, %v1301
    %v1806 = vpack.c.b16 %v1306, %v1302
    %v1807 = vpack.c.b16 %v1307, %v1303
    %v1808 = vpack.c.b16 %v1308, %v1304
    %v1809 = vpack.c.b16 %v1313, %v1309
    %v1810 = vpack.c.b16 %v1314, %v1310
    %v1811 = vpack.c.b16 %v1315, %v1311
    %v1812 = vpack.c.b16 %v1316, %v1312
    %v1813 = vpack.c.b16 %v1321, %v1317
    %v1814 = vpack.c.b16 %v1322, %v1318
    %v1815 = vpack.c.b16 %v1323, %v1319
    %v1816 = vpack.c.b16 %v1324, %v1320
    %v1817 = vpack.c.b16 %v1329, %v1325
    %v1818 = vpack.c.b16 %v1330, %v1326
    %v1819 = vpack.c.b16 %v1331, %v1327
    %v1820 = vpack.c.b16 %v1332, %v1328
    %v1821 = vpack.c.b16 %v1337, %v1333
    %v1822 = vpack.c.b16 %v1338, %v1334
    %v1823 = vpack.c.b16 %v1339, %v1335
    %v1824 = vpack.c.b16 %v1340, %v1336
    %v1825 = vpack.c.b16 %v1345, %v1341
    %v1826 = vpack.c.b16 %v1346, %v1342
    %v1827 = vpack.c.b16 %v1347, %v1343
    %v1828 = vpack.c.b16 %v1348, %v1344
    %v1829 = vpack.c.b16 %v1353, %v1349
    %v1830 = vpack.c.b16 %v1354, %v1350
    %v1831 = vpack.c.b16 %v1355, %v1351
    %v1832 = vpack.c.b16 %v1356, %v1352
    %v1833 = vpack.c.b16 %v1361, %v1357
    %v1834 = vpack.c.b16 %v1362, %v1358
    %v1835 = vpack.c.b16 %v1363, %v1359
    %v1836 = vpack.c.b16 %v1364, %v1360
    %v1837 = vpack.c.b16 %v1369, %v1365
    %v1838 = vpack.c.b16 %v1370, %v1366
    %v1839 = vpack.c.b16 %v1371, %v1367
    %v1840 = vpack.c.b16 %v1372, %v1368
    %v1841 = vpack.c.b16 %v1377, %v1373
    %v1842 = vpack.c.b16 %v1378, %v1374
    %v1843 = vpack.c.b16 %v1379, %v1375
    %v1844 = vpack.c.b16 %v1380, %v1376
    %v1845 = vpack.c.b16 %v1385, %v1381
    %v1846 = vpack.c.b16 %v1386, %v1382
    %v1847 = vpack.c.b16 %v1387, %v1383
    %v1848 = vpack.c.b16 %v1388, %v1384
    %v1849 = vpack.c.b16 %v1393, %v1389
    %v1850 = vpack.c.b16 %v1394, %v1390
    %v1851 = vpack.c.b16 %v1395, %v1391
    %v1852 = vpack.c.b16 %v1396, %v1392
    %v1853 = vpack.c.b16 %v1401, %v1397
    %v1854 = vpack.c.b16 %v1402, %v1398
    %v1855 = vpack.c.b16 %v1403, %v1399
    %v1856 = vpack.c.b16 %v1404, %v1400
    %v1857 = vpack.c.b16 %v1409, %v1405
    %v1858 = vpack.c.b16 %v1410, %v1406
    %v1859 = vpack.c.b16 %v1411, %v1407
    %v1860 = vpack.c.b16 %v1412, %v1408
    %v1861 = vpack.c.b16 %v1417, %v1413
    %v1862 = vpack.c.b16 %v1418, %v1414
    %v1863 = vpack.c.b16 %v1419, %v1415
    %v1864 = vpack.c.b16 %v1420, %v1416
    %v1865 = vpack.c.b16 %v1425, %v1421
    %v1866 = vpack.c.b16 %v1426, %v1422
    %v1867 = vpack.c.b16 %v1427, %v1423
    %v1868 = vpack.c.b16 %v1428, %v1424
    %v1869 = vpack.c.b16 %v1433, %v1429
    %v1870 = vpack.c.b16 %v1434, %v1430
    %v1871 = vpack.c.b16 %v1435, %v1431
    %v1872 = vpack.c.b16 %v1436, %v1432
    %v1873 = vpack.c.b16 %v1441, %v1437
    %v1874 = vpack.c.b16 %v1442, %v1438
    %v1875 = vpack.c.b16 %v1443, %v1439
    %v1876 = vpack.c.b16 %v1444, %v1440
    %v1877 = vpack.c.b16 %v1449, %v1445
    %v1878 = vpack.c.b16 %v1450, %v1446
    %v1879 = vpack.c.b16 %v1451, %v1447
    %v1880 = vpack.c.b16 %v1452, %v1448
    %v1881 = vpack.c.b16 %v1457, %v1453
    %v1882 = vpack.c.b16 %v1458, %v1454
    %v1883 = vpack.c.b16 %v1459, %v1455
    %v1884 = vpack.c.b16 %v1460, %v1456
    %v1885 = vpack.c.b16 %v1465, %v1461
    %v1886 = vpack.c.b16 %v1466, %v1462
    %v1887 = vpack.c.b16 %v1467, %v1463
    %v1888 = vpack.c.b16 %v1468, %v1464
    %v1889 = vpack.c.b16 %v1473, %v1469
    %v1890 = vpack.c.b16 %v1474, %v1470
    %v1891 = vpack.c.b16 %v1475, %v1471
    %v1892 = vpack.c.b16 %v1476, %v1472
    %v1893 = vpack.c.b16 %v1481, %v1477
    %v1894 = vpack.c.b16 %v1482, %v1478
    %v1895 = vpack.c.b16 %v1483, %v1479
    %v1896 = vpack.c.b16 %v1484, %v1480
    %v1897 = vpack.c.b16 %v1489, %v1485
    %v1898 = vpack.c.b16 %v1490, %v1486
    %v1899 = vpack.c.b16 %v1491, %v1487
    %v1900 = vpack.c.b16 %v1492, %v1488
    %v1901 = vpack.c.b16 %v1497, %v1493
    %v1902 = vpack.c.b16 %v1498, %v1494
    %v1903 = vpack.c.b16 %v1499, %v1495
    %v1904 = vpack.c.b16 %v1500, %v1496
    %v1905 = vpack.c.b16 %v1505, %v1501
    %v1906 = vpack.c.b16 %v1506, %v1502
    %v1907 = vpack.c.b16 %v1507, %v1503
    %v1908 = vpack.c.b16 %v1508, %v1504
    %v1909 = vpack.c.b16 %v1513, %v1509
    %v1910 = vpack.c.b16 %v1514, %v1510
    %v1911 = vpack.c.b16 %v1515, %v1511
    %v1912 = vpack.c.b16 %v1516, %v1512
    %v1913 = vpack.c.b16 %v1521, %v1517
    %v1914 = vpack.c.b16 %v1522, %v1518
    %v1915 = vpack.c.b16 %v1523, %v1519
    %v1916 = vpack.c.b16 %v1524, %v1520
    %v1917 = vpack.c.b16 %v1529, %v1525
    %v1918 = vpack.c.b16 %v1530, %v1526
    %v1919 = vpack.c.b16 %v1531, %v1527
    %v1920 = vpack.c.b16 %v1532, %v1528
    %v1921 = vpack.c.b16 %v1537, %v1533
    %v1922 = vpack.c.b16 %v1538, %v1534
    %v1923 = vpack.c.b16 %v1539, %v1535
    %v1924 = vpack.c.b16 %v1540, %v1536
    %v1925 = vpack.c.b16 %v1545, %v1541
    %v1926 = vpack.c.b16 %v1546, %v1542
    %v1927 = vpack.c.b16 %v1547, %v1543
    %v1928 = vpack.c.b16 %v1548, %v1544
    %v1929 = vpack.c.b16 %v1553, %v1549
    %v1930 = vpack.c.b16 %v1554, %v1550
    %v1931 = vpack.c.b16 %v1555, %v1551
    %v1932 = vpack.c.b16 %v1556, %v1552
    %v1933 = vpack.c.b16 %v1561, %v1557
    %v1934 = vpack.c.b16 %v1562, %v1558
    %v1935 = vpack.c.b16 %v1563, %v1559
    %v1936 = vpack.c.b16 %v1564, %v1560
    %v1937 = vpack.c.b16 %v1569, %v1565
    %v1938 = vpack.c.b16 %v1570, %v1566
    %v1939 = vpack.c.b16 %v1571, %v1567
    %v1940 = vpack.c.b16 %v1572, %v1568
    %v1941 = vpack.c.b16 %v1577, %v1573
    %v1942 = vpack.c.b16 %v1578, %v1574
    %v1943 = vpack.c.b16 %v1579, %v1575
    %v1944 = vpack.c.b16 %v1580, %v1576
    %v1945 = vpack.c.b16 %v1585, %v1581
    %v1946 = vpack.c.b16 %v1586, %v1582
    %v1947 = vpack.c.b16 %v1587, %v1583
    %v1948 = vpack.c.b16 %v1588, %v1584
    %v1949 = vpack.c.b16 %v1593, %v1589
    %v1950 = vpack.c.b16 %v1594, %v1590
    %v1951 = vpack.c.b16 %v1595, %v1591
    %v1952 = vpack.c.b16 %v1596, %v1592
    %v1953 = vpack.c.b16 %v1601, %v1597
    %v1954 = vpack.c.b16 %v1602, %v1598
    %v1955 = vpack.c.b16 %v1603, %v1599
    %v1956 = vpack.c.b16 %v1604, %v1600
    %v1957 = vpack.c.b16 %v1605, %v1605
    %v1958 = vpack.c.b16 %v1606, %v1606
    %v1959 = vpack.c.b16 %v1607, %v1607
    %v1960 = vpack.c.b16 %v1608, %v1608
    %vm2309 = vcmask 982016
    %v2311 = vsel %vm2309, %v548, 0
    %vm2313 = vcmask 1043456
    %v2315 = vsel %vm2313, %v1957, 0
    %v2318 = vsel %vm2313, %v1958, 0
    %v2321 = vsel %vm2313, %v1959, 0
    %v2324 = vsel %vm2313, %v1960, 0
    %2326 = vmatprep.subr.bf16.mxu0 %v1638
    %2327 = vmatpush1.bf16.msra.mxu0 %v1637
    %2328 = vmatprep.subr.bf16.mxu0 %v1634
    %2329 = vmatpush1.bf16.msra.mxu0 %v1633
    %2330 = vmatprep.subr.bf16.mxu0 %v1630
    %2331 = vmatpush1.bf16.msra.mxu0 %v1629
    %2332 = vmatprep.subr.bf16.mxu0 %v1626
    %2333 = vmatpush1.bf16.msra.mxu0 %v1625
    %2334 = vmatprep.subr.bf16.mxu0 %v1622
    %2335 = vmatpush1.bf16.msra.mxu0 %v1621
    %2336 = vmatprep.subr.bf16.mxu0 %v1618
    %2337 = vmatpush1.bf16.msra.mxu0 %v1617
    %2338 = vmatprep.subr.bf16.mxu0 %v1614
    %2339 = vmatpush1.bf16.msra.mxu0 %v1613
    %2340 = vmatprep.subr.bf16.mxu0 %v1610
    %2341 = vmatpush1.bf16.msra.mxu0 %v1609
    %2342 = vmatprep.subr.bf16.mxu0 %v1670
    %2343 = vmatpush2.bf16.msra.mxu0 %v1669
    %2344 = vmatprep.subr.bf16.mxu0 %v1666
    %2345 = vmatpush2.bf16.msra.mxu0 %v1665
    %2346 = vmatprep.subr.bf16.mxu0 %v1662
    %2347 = vmatpush2.bf16.msra.mxu0 %v1661
    %2348 = vmatprep.subr.bf16.mxu0 %v1658
    %2349 = vmatpush2.bf16.msra.mxu0 %v1657
    %2350 = vmatprep.subr.bf16.mxu0 %v1654
    %2351 = vmatpush2.bf16.msra.mxu0 %v1653
    %2352 = vmatprep.subr.bf16.mxu0 %v1650
    %2353 = vmatpush2.bf16.msra.mxu0 %v1649
    %2354 = vmatprep.subr.bf16.mxu0 %v1646
    %2355 = vmatpush2.bf16.msra.mxu0 %v1645
    %2356 = vmatprep.subr.bf16.mxu0 %v1642
    %2357 = vmatpush2.bf16.msra.mxu0 %v1641
    %2358 = vmatprep.mubr.bf16.mxu0 %v539
    %2359 = vmatmul.mubr.bf16.gmra.mxu0 %v538
    %v2360 = vpop.f32.mrf.mxu0
    %v2361 = vadd.f32 %v487, %v2360
    %v2362 = vpop.f32.mrf.mxu0
    %v2363 = vadd.f32 %v491, %v2362
    %v2364 = vpop.f32.mrf.mxu0
    %v2365 = vadd.f32 %v487, %v2364
    %v2366 = vpop.f32.mrf.mxu0
    %v2367 = vadd.f32 %v491, %v2366
    %2368 = vdwg.mxu0
    %2369 = vmatprep.subr.bf16.mxu0 %v1702
    %2370 = vmatpush1.bf16.msra.mxu0 %v1701
    %2371 = vmatprep.subr.bf16.mxu0 %v1698
    %2372 = vmatpush1.bf16.msra.mxu0 %v1697
    %2373 = vmatprep.subr.bf16.mxu0 %v1694
    %2374 = vmatpush1.bf16.msra.mxu0 %v1693
    %2375 = vmatprep.subr.bf16.mxu0 %v1690
    %2376 = vmatpush1.bf16.msra.mxu0 %v1689
    %2377 = vmatprep.subr.bf16.mxu0 %v1686
    %2378 = vmatpush1.bf16.msra.mxu0 %v1685
    %2379 = vmatprep.subr.bf16.mxu0 %v1682
    %2380 = vmatpush1.bf16.msra.mxu0 %v1681
    %2381 = vmatprep.subr.bf16.mxu0 %v1678
    %2382 = vmatpush1.bf16.msra.mxu0 %v1677
    %2383 = vmatprep.subr.bf16.mxu0 %v1674
    %2384 = vmatpush1.bf16.msra.mxu0 %v1673
    %2385 = vmatprep.subr.bf16.mxu0 %v1734
    %2386 = vmatpush2.bf16.msra.mxu0 %v1733
    %2387 = vmatprep.subr.bf16.mxu0 %v1730
    %2388 = vmatpush2.bf16.msra.mxu0 %v1729
    %2389 = vmatprep.subr.bf16.mxu0 %v1726
    %2390 = vmatpush2.bf16.msra.mxu0 %v1725
    %2391 = vmatprep.subr.bf16.mxu0 %v1722
    %2392 = vmatpush2.bf16.msra.mxu0 %v1721
    %2393 = vmatprep.subr.bf16.mxu0 %v1718
    %2394 = vmatpush2.bf16.msra.mxu0 %v1717
    %2395 = vmatprep.subr.bf16.mxu0 %v1714
    %2396 = vmatpush2.bf16.msra.mxu0 %v1713
    %2397 = vmatprep.subr.bf16.mxu0 %v1710
    %2398 = vmatpush2.bf16.msra.mxu0 %v1709
    %2399 = vmatprep.subr.bf16.mxu0 %v1706
    %2400 = vmatpush2.bf16.msra.mxu0 %v1705
    %2401 = vmatprep.mubr.bf16.mxu0 %v541
    %2402 = vmatmul.mubr.bf16.gmra.mxu0 %v540
    %v2403 = vpop.f32.mrf.mxu0
    %v2404 = vadd.f32 %v2361, %v2403
    %v2405 = vpop.f32.mrf.mxu0
    %v2406 = vadd.f32 %v2363, %v2405
    %v2407 = vpop.f32.mrf.mxu0
    %v2408 = vadd.f32 %v2365, %v2407
    %v2409 = vpop.f32.mrf.mxu0
    %v2410 = vadd.f32 %v2367, %v2409
    %2411 = vdwg.mxu0
    %2412 = vmatprep.subr.bf16.mxu0 %v1766
    %2413 = vmatpush1.bf16.msra.mxu0 %v1765
    %2414 = vmatprep.subr.bf16.mxu0 %v1762
    %2415 = vmatpush1.bf16.msra.mxu0 %v1761
    %2416 = vmatprep.subr.bf16.mxu0 %v1758
    %2417 = vmatpush1.bf16.msra.mxu0 %v1757
    %2418 = vmatprep.subr.bf16.mxu0 %v1754
    %2419 = vmatpush1.bf16.msra.mxu0 %v1753
    %2420 = vmatprep.subr.bf16.mxu0 %v1750
    %2421 = vmatpush1.bf16.msra.mxu0 %v1749
    %2422 = vmatprep.subr.bf16.mxu0 %v1746
    %2423 = vmatpush1.bf16.msra.mxu0 %v1745
    %2424 = vmatprep.subr.bf16.mxu0 %v1742
    %2425 = vmatpush1.bf16.msra.mxu0 %v1741
    %2426 = vmatprep.subr.bf16.mxu0 %v1738
    %2427 = vmatpush1.bf16.msra.mxu0 %v1737
    %2428 = vmatprep.subr.bf16.mxu0 %v1798
    %2429 = vmatpush2.bf16.msra.mxu0 %v1797
    %2430 = vmatprep.subr.bf16.mxu0 %v1794
    %2431 = vmatpush2.bf16.msra.mxu0 %v1793
    %2432 = vmatprep.subr.bf16.mxu0 %v1790
    %2433 = vmatpush2.bf16.msra.mxu0 %v1789
    %2434 = vmatprep.subr.bf16.mxu0 %v1786
    %2435 = vmatpush2.bf16.msra.mxu0 %v1785
    %2436 = vmatprep.subr.bf16.mxu0 %v1782
    %2437 = vmatpush2.bf16.msra.mxu0 %v1781
    %2438 = vmatprep.subr.bf16.mxu0 %v1778
    %2439 = vmatpush2.bf16.msra.mxu0 %v1777
    %2440 = vmatprep.subr.bf16.mxu0 %v1774
    %2441 = vmatpush2.bf16.msra.mxu0 %v1773
    %2442 = vmatprep.subr.bf16.mxu0 %v1770
    %2443 = vmatpush2.bf16.msra.mxu0 %v1769
    %2444 = vmatprep.mubr.bf16.mxu0 %v543
    %2445 = vmatmul.mubr.bf16.gmra.mxu0 %v542
    %v2446 = vpop.f32.mrf.mxu0
    %v2447 = vadd.f32 %v2404, %v2446
    %v2448 = vpop.f32.mrf.mxu0
    %v2449 = vadd.f32 %v2406, %v2448
    %v2450 = vpop.f32.mrf.mxu0
    %v2451 = vadd.f32 %v2408, %v2450
    %v2452 = vpop.f32.mrf.mxu0
    %v2453 = vadd.f32 %v2410, %v2452
    %2454 = vdwg.mxu0
    %2455 = vmatprep.subr.bf16.mxu0 %v1830
    %2456 = vmatpush1.bf16.msra.mxu0 %v1829
    %2457 = vmatprep.subr.bf16.mxu0 %v1826
    %2458 = vmatpush1.bf16.msra.mxu0 %v1825
    %2459 = vmatprep.subr.bf16.mxu0 %v1822
    %2460 = vmatpush1.bf16.msra.mxu0 %v1821
    %2461 = vmatprep.subr.bf16.mxu0 %v1818
    %2462 = vmatpush1.bf16.msra.mxu0 %v1817
    %2463 = vmatprep.subr.bf16.mxu0 %v1814
    %2464 = vmatpush1.bf16.msra.mxu0 %v1813
    %2465 = vmatprep.subr.bf16.mxu0 %v1810
    %2466 = vmatpush1.bf16.msra.mxu0 %v1809
    %2467 = vmatprep.subr.bf16.mxu0 %v1806
    %2468 = vmatpush1.bf16.msra.mxu0 %v1805
    %2469 = vmatprep.subr.bf16.mxu0 %v1802
    %2470 = vmatpush1.bf16.msra.mxu0 %v1801
    %2471 = vmatprep.subr.bf16.mxu0 %v1862
    %2472 = vmatpush2.bf16.msra.mxu0 %v1861
    %2473 = vmatprep.subr.bf16.mxu0 %v1858
    %2474 = vmatpush2.bf16.msra.mxu0 %v1857
    %2475 = vmatprep.subr.bf16.mxu0 %v1854
    %2476 = vmatpush2.bf16.msra.mxu0 %v1853
    %2477 = vmatprep.subr.bf16.mxu0 %v1850
    %2478 = vmatpush2.bf16.msra.mxu0 %v1849
    %2479 = vmatprep.subr.bf16.mxu0 %v1846
    %2480 = vmatpush2.bf16.msra.mxu0 %v1845
    %2481 = vmatprep.subr.bf16.mxu0 %v1842
    %2482 = vmatpush2.bf16.msra.mxu0 %v1841
    %2483 = vmatprep.subr.bf16.mxu0 %v1838
    %2484 = vmatpush2.bf16.msra.mxu0 %v1837
    %2485 = vmatprep.subr.bf16.mxu0 %v1834
    %2486 = vmatpush2.bf16.msra.mxu0 %v1833
    %2487 = vmatprep.mubr.bf16.mxu0 %v545
    %2488 = vmatmul.mubr.bf16.gmra.mxu0 %v544
    %v2489 = vpop.f32.mrf.mxu0
    %v2490 = vadd.f32 %v2447, %v2489
    %v2491 = vpop.f32.mrf.mxu0
    %v2492 = vadd.f32 %v2449, %v2491
    %v2493 = vpop.f32.mrf.mxu0
    %v2494 = vadd.f32 %v2451, %v2493
    %v2495 = vpop.f32.mrf.mxu0
    %v2496 = vadd.f32 %v2453, %v2495
    %2497 = vdwg.mxu0
    %2498 = vmatprep.subr.bf16.mxu0 %v1894
    %2499 = vmatpush1.bf16.msra.mxu0 %v1893
    %2500 = vmatprep.subr.bf16.mxu0 %v1890
    %2501 = vmatpush1.bf16.msra.mxu0 %v1889
    %2502 = vmatprep.subr.bf16.mxu0 %v1886
    %2503 = vmatpush1.bf16.msra.mxu0 %v1885
    %2504 = vmatprep.subr.bf16.mxu0 %v1882
    %2505 = vmatpush1.bf16.msra.mxu0 %v1881
    %2506 = vmatprep.subr.bf16.mxu0 %v1878
    %2507 = vmatpush1.bf16.msra.mxu0 %v1877
    %2508 = vmatprep.subr.bf16.mxu0 %v1874
    %2509 = vmatpush1.bf16.msra.mxu0 %v1873
    %2510 = vmatprep.subr.bf16.mxu0 %v1870
    %2511 = vmatpush1.bf16.msra.mxu0 %v1869
    %2512 = vmatprep.subr.bf16.mxu0 %v1866
    %2513 = vmatpush1.bf16.msra.mxu0 %v1865
    %2514 = vmatprep.subr.bf16.mxu0 %v1926
    %2515 = vmatpush2.bf16.msra.mxu0 %v1925
    %2516 = vmatprep.subr.bf16.mxu0 %v1922
    %2517 = vmatpush2.bf16.msra.mxu0 %v1921
    %2518 = vmatprep.subr.bf16.mxu0 %v1918
    %2519 = vmatpush2.bf16.msra.mxu0 %v1917
    %2520 = vmatprep.subr.bf16.mxu0 %v1914
    %2521 = vmatpush2.bf16.msra.mxu0 %v1913
    %2522 = vmatprep.subr.bf16.mxu0 %v1910
    %2523 = vmatpush2.bf16.msra.mxu0 %v1909
    %2524 = vmatprep.subr.bf16.mxu0 %v1906
    %2525 = vmatpush2.bf16.msra.mxu0 %v1905
    %2526 = vmatprep.subr.bf16.mxu0 %v1902
    %2527 = vmatpush2.bf16.msra.mxu0 %v1901
    %2528 = vmatprep.subr.bf16.mxu0 %v1898
    %2529 = vmatpush2.bf16.msra.mxu0 %v1897
    %2530 = vmatprep.mubr.bf16.mxu0 %v547
    %2531 = vmatmul.mubr.bf16.gmra.mxu0 %v546
    %v2532 = vpop.f32.mrf.mxu0
    %v2533 = vadd.f32 %v2490, %v2532
    %v2534 = vpop.f32.mrf.mxu0
    %v2535 = vadd.f32 %v2492, %v2534
    %v2536 = vpop.f32.mrf.mxu0
    %v2537 = vadd.f32 %v2494, %v2536
    %v2538 = vpop.f32.mrf.mxu0
    %v2539 = vadd.f32 %v2496, %v2538
    %2540 = vdwg.mxu0
    %2541 = vmatprep.subr.bf16.mxu0 %v2318
    %2542 = vmatpush1.bf16.msra.mxu0 %v2315
    %2543 = vmatprep.subr.bf16.mxu0 %v1954
    %2544 = vmatpush1.bf16.msra.mxu0 %v1953
    %2545 = vmatprep.subr.bf16.mxu0 %v1950
    %2546 = vmatpush1.bf16.msra.mxu0 %v1949
    %2547 = vmatprep.subr.bf16.mxu0 %v1946
    %2548 = vmatpush1.bf16.msra.mxu0 %v1945
    %2549 = vmatprep.subr.bf16.mxu0 %v1942
    %2550 = vmatpush1.bf16.msra.mxu0 %v1941
    %2551 = vmatprep.subr.bf16.mxu0 %v1938
    %2552 = vmatpush1.bf16.msra.mxu0 %v1937
    %2553 = vmatprep.subr.bf16.mxu0 %v1934
    %2554 = vmatpush1.bf16.msra.mxu0 %v1933
    %2555 = vmatprep.subr.bf16.mxu0 %v1930
    %2556 = vmatpush1.bf16.msra.mxu0 %v1929
    %2557 = vmatprep.subr.bf16.mxu0 0
    %2558 = vmatpush2.bf16.msra.mxu0 0
    %2559 = vmatprep.subr.bf16.mxu0 0
    %2560 = vmatpush2.bf16.msra.mxu0 0
    %2561 = vmatprep.subr.bf16.mxu0 0
    %2562 = vmatpush2.bf16.msra.mxu0 0
    %2563 = vmatprep.subr.bf16.mxu0 0
    %2564 = vmatpush2.bf16.msra.mxu0 0
    %2565 = vmatprep.subr.bf16.mxu0 0
    %2566 = vmatpush2.bf16.msra.mxu0 0
    %2567 = vmatprep.subr.bf16.mxu0 0
    %2568 = vmatpush2.bf16.msra.mxu0 0
    %2569 = vmatprep.subr.bf16.mxu0 0
    %2570 = vmatpush2.bf16.msra.mxu0 0
    %2571 = vmatprep.subr.bf16.mxu0 0
    %2572 = vmatpush2.bf16.msra.mxu0 0
    %2573 = vmatprep.mubr.bf16.mxu0 0
    %2574 = vmatmul.mubr.bf16.gmra.mxu0 %v2311
    %v2575 = vpop.f32.mrf.mxu0
    %v2576 = vadd.f32 %v2533, %v2575
    %v2577 = vpop.f32.mrf.mxu0
    %v2578 = vadd.f32 %v2535, %v2577
    %v2579 = vpop.f32.mrf.mxu0
    %v2580 = vadd.f32 %v2537, %v2579
    %v2581 = vpop.f32.mrf.mxu0
    %v2582 = vadd.f32 %v2539, %v2581
    %2583 = vdwg.mxu0
    %2584 = vmatprep.subr.bf16.mxu0 %v1640
    %2585 = vmatpush1.bf16.msra.mxu0 %v1639
    %2586 = vmatprep.subr.bf16.mxu0 %v1636
    %2587 = vmatpush1.bf16.msra.mxu0 %v1635
    %2588 = vmatprep.subr.bf16.mxu0 %v1632
    %2589 = vmatpush1.bf16.msra.mxu0 %v1631
    %2590 = vmatprep.subr.bf16.mxu0 %v1628
    %2591 = vmatpush1.bf16.msra.mxu0 %v1627
    %2592 = vmatprep.subr.bf16.mxu0 %v1624
    %2593 = vmatpush1.bf16.msra.mxu0 %v1623
    %2594 = vmatprep.subr.bf16.mxu0 %v1620
    %2595 = vmatpush1.bf16.msra.mxu0 %v1619
    %2596 = vmatprep.subr.bf16.mxu0 %v1616
    %2597 = vmatpush1.bf16.msra.mxu0 %v1615
    %2598 = vmatprep.subr.bf16.mxu0 %v1612
    %2599 = vmatpush1.bf16.msra.mxu0 %v1611
    %2600 = vmatprep.subr.bf16.mxu0 %v1672
    %2601 = vmatpush2.bf16.msra.mxu0 %v1671
    %2602 = vmatprep.subr.bf16.mxu0 %v1668
    %2603 = vmatpush2.bf16.msra.mxu0 %v1667
    %2604 = vmatprep.subr.bf16.mxu0 %v1664
    %2605 = vmatpush2.bf16.msra.mxu0 %v1663
    %2606 = vmatprep.subr.bf16.mxu0 %v1660
    %2607 = vmatpush2.bf16.msra.mxu0 %v1659
    %2608 = vmatprep.subr.bf16.mxu0 %v1656
    %2609 = vmatpush2.bf16.msra.mxu0 %v1655
    %2610 = vmatprep.subr.bf16.mxu0 %v1652
    %2611 = vmatpush2.bf16.msra.mxu0 %v1651
    %2612 = vmatprep.subr.bf16.mxu0 %v1648
    %2613 = vmatpush2.bf16.msra.mxu0 %v1647
    %2614 = vmatprep.subr.bf16.mxu0 %v1644
    %2615 = vmatpush2.bf16.msra.mxu0 %v1643
    %2616 = vmatprep.mubr.bf16.mxu0 %v539
    %2617 = vmatmul.mubr.bf16.gmra.mxu0 %v538
    %v2618 = vpop.f32.mrf.mxu0
    %v2619 = vadd.f32 %v495, %v2618
    %v2620 = vpop.f32.mrf.mxu0
    %v2621 = vadd.f32 %v499, %v2620
    %v2622 = vpop.f32.mrf.mxu0
    %v2623 = vadd.f32 %v495, %v2622
    %v2624 = vpop.f32.mrf.mxu0
    %v2625 = vadd.f32 %v499, %v2624
    %2626 = vdwg.mxu0
    %2627 = vmatprep.subr.bf16.mxu0 %v1704
    %2628 = vmatpush1.bf16.msra.mxu0 %v1703
    %2629 = vmatprep.subr.bf16.mxu0 %v1700
    %2630 = vmatpush1.bf16.msra.mxu0 %v1699
    %2631 = vmatprep.subr.bf16.mxu0 %v1696
    %2632 = vmatpush1.bf16.msra.mxu0 %v1695
    %2633 = vmatprep.subr.bf16.mxu0 %v1692
    %2634 = vmatpush1.bf16.msra.mxu0 %v1691
    %2635 = vmatprep.subr.bf16.mxu0 %v1688
    %2636 = vmatpush1.bf16.msra.mxu0 %v1687
    %2637 = vmatprep.subr.bf16.mxu0 %v1684
    %2638 = vmatpush1.bf16.msra.mxu0 %v1683
    %2639 = vmatprep.subr.bf16.mxu0 %v1680
    %2640 = vmatpush1.bf16.msra.mxu0 %v1679
    %2641 = vmatprep.subr.bf16.mxu0 %v1676
    %2642 = vmatpush1.bf16.msra.mxu0 %v1675
    %2643 = vmatprep.subr.bf16.mxu0 %v1736
    %2644 = vmatpush2.bf16.msra.mxu0 %v1735
    %2645 = vmatprep.subr.bf16.mxu0 %v1732
    %2646 = vmatpush2.bf16.msra.mxu0 %v1731
    %2647 = vmatprep.subr.bf16.mxu0 %v1728
    %2648 = vmatpush2.bf16.msra.mxu0 %v1727
    %2649 = vmatprep.subr.bf16.mxu0 %v1724
    %2650 = vmatpush2.bf16.msra.mxu0 %v1723
    %2651 = vmatprep.subr.bf16.mxu0 %v1720
    %2652 = vmatpush2.bf16.msra.mxu0 %v1719
    %2653 = vmatprep.subr.bf16.mxu0 %v1716
    %2654 = vmatpush2.bf16.msra.mxu0 %v1715
    %2655 = vmatprep.subr.bf16.mxu0 %v1712
    %2656 = vmatpush2.bf16.msra.mxu0 %v1711
    %2657 = vmatprep.subr.bf16.mxu0 %v1708
    %2658 = vmatpush2.bf16.msra.mxu0 %v1707
    %2659 = vmatprep.mubr.bf16.mxu0 %v541
    %2660 = vmatmul.mubr.bf16.gmra.mxu0 %v540
    %v2661 = vpop.f32.mrf.mxu0
    %v2662 = vadd.f32 %v2619, %v2661
    %v2663 = vpop.f32.mrf.mxu0
    %v2664 = vadd.f32 %v2621, %v2663
    %v2665 = vpop.f32.mrf.mxu0
    %v2666 = vadd.f32 %v2623, %v2665
    %v2667 = vpop.f32.mrf.mxu0
    %v2668 = vadd.f32 %v2625, %v2667
    %2669 = vdwg.mxu0
    %2670 = vmatprep.subr.bf16.mxu0 %v1768
    %2671 = vmatpush1.bf16.msra.mxu0 %v1767
    %2672 = vmatprep.subr.bf16.mxu0 %v1764
    %2673 = vmatpush1.bf16.msra.mxu0 %v1763
    %2674 = vmatprep.subr.bf16.mxu0 %v1760
    %2675 = vmatpush1.bf16.msra.mxu0 %v1759
    %2676 = vmatprep.subr.bf16.mxu0 %v1756
    %2677 = vmatpush1.bf16.msra.mxu0 %v1755
    %2678 = vmatprep.subr.bf16.mxu0 %v1752
    %2679 = vmatpush1.bf16.msra.mxu0 %v1751
    %2680 = vmatprep.subr.bf16.mxu0 %v1748
    %2681 = vmatpush1.bf16.msra.mxu0 %v1747
    %2682 = vmatprep.subr.bf16.mxu0 %v1744
    %2683 = vmatpush1.bf16.msra.mxu0 %v1743
    %2684 = vmatprep.subr.bf16.mxu0 %v1740
    %2685 = vmatpush1.bf16.msra.mxu0 %v1739
    %2686 = vmatprep.subr.bf16.mxu0 %v1800
    %2687 = vmatpush2.bf16.msra.mxu0 %v1799
    %2688 = vmatprep.subr.bf16.mxu0 %v1796
    %2689 = vmatpush2.bf16.msra.mxu0 %v1795
    %2690 = vmatprep.subr.bf16.mxu0 %v1792
    %2691 = vmatpush2.bf16.msra.mxu0 %v1791
    %2692 = vmatprep.subr.bf16.mxu0 %v1788
    %2693 = vmatpush2.bf16.msra.mxu0 %v1787
    %2694 = vmatprep.subr.bf16.mxu0 %v1784
    %2695 = vmatpush2.bf16.msra.mxu0 %v1783
    %2696 = vmatprep.subr.bf16.mxu0 %v1780
    %2697 = vmatpush2.bf16.msra.mxu0 %v1779
    %2698 = vmatprep.subr.bf16.mxu0 %v1776
    %2699 = vmatpush2.bf16.msra.mxu0 %v1775
    %2700 = vmatprep.subr.bf16.mxu0 %v1772
    %2701 = vmatpush2.bf16.msra.mxu0 %v1771
    %2702 = vmatprep.mubr.bf16.mxu0 %v543
    %2703 = vmatmul.mubr.bf16.gmra.mxu0 %v542
    %v2704 = vpop.f32.mrf.mxu0
    %v2705 = vadd.f32 %v2662, %v2704
    %v2706 = vpop.f32.mrf.mxu0
    %v2707 = vadd.f32 %v2664, %v2706
    %v2708 = vpop.f32.mrf.mxu0
    %v2709 = vadd.f32 %v2666, %v2708
    %v2710 = vpop.f32.mrf.mxu0
    %v2711 = vadd.f32 %v2668, %v2710
    %2712 = vdwg.mxu0
    %2713 = vmatprep.subr.bf16.mxu0 %v1832
    %2714 = vmatpush1.bf16.msra.mxu0 %v1831
    %2715 = vmatprep.subr.bf16.mxu0 %v1828
    %2716 = vmatpush1.bf16.msra.mxu0 %v1827
    %2717 = vmatprep.subr.bf16.mxu0 %v1824
    %2718 = vmatpush1.bf16.msra.mxu0 %v1823
    %2719 = vmatprep.subr.bf16.mxu0 %v1820
    %2720 = vmatpush1.bf16.msra.mxu0 %v1819
    %2721 = vmatprep.subr.bf16.mxu0 %v1816
    %2722 = vmatpush1.bf16.msra.mxu0 %v1815
    %2723 = vmatprep.subr.bf16.mxu0 %v1812
    %2724 = vmatpush1.bf16.msra.mxu0 %v1811
    %2725 = vmatprep.subr.bf16.mxu0 %v1808
    %2726 = vmatpush1.bf16.msra.mxu0 %v1807
    %2727 = vmatprep.subr.bf16.mxu0 %v1804
    %2728 = vmatpush1.bf16.msra.mxu0 %v1803
    %2729 = vmatprep.subr.bf16.mxu0 %v1864
    %2730 = vmatpush2.bf16.msra.mxu0 %v1863
    %2731 = vmatprep.subr.bf16.mxu0 %v1860
    %2732 = vmatpush2.bf16.msra.mxu0 %v1859
    %2733 = vmatprep.subr.bf16.mxu0 %v1856
    %2734 = vmatpush2.bf16.msra.mxu0 %v1855
    %2735 = vmatprep.subr.bf16.mxu0 %v1852
    %2736 = vmatpush2.bf16.msra.mxu0 %v1851
    %2737 = vmatprep.subr.bf16.mxu0 %v1848
    %2738 = vmatpush2.bf16.msra.mxu0 %v1847
    %2739 = vmatprep.subr.bf16.mxu0 %v1844
    %2740 = vmatpush2.bf16.msra.mxu0 %v1843
    %2741 = vmatprep.subr.bf16.mxu0 %v1840
    %2742 = vmatpush2.bf16.msra.mxu0 %v1839
    %2743 = vmatprep.subr.bf16.mxu0 %v1836
    %2744 = vmatpush2.bf16.msra.mxu0 %v1835
    %2745 = vmatprep.mubr.bf16.mxu0 %v545
    %2746 = vmatmul.mubr.bf16.gmra.mxu0 %v544
    %v2747 = vpop.f32.mrf.mxu0
    %v2748 = vadd.f32 %v2705, %v2747
    %v2749 = vpop.f32.mrf.mxu0
    %v2750 = vadd.f32 %v2707, %v2749
    %v2751 = vpop.f32.mrf.mxu0
    %v2752 = vadd.f32 %v2709, %v2751
    %v2753 = vpop.f32.mrf.mxu0
    %v2754 = vadd.f32 %v2711, %v2753
    %2755 = vdwg.mxu0
    %2756 = vmatprep.subr.bf16.mxu0 %v1896
    %2757 = vmatpush1.bf16.msra.mxu0 %v1895
    %2758 = vmatprep.subr.bf16.mxu0 %v1892
    %2759 = vmatpush1.bf16.msra.mxu0 %v1891
    %2760 = vmatprep.subr.bf16.mxu0 %v1888
    %2761 = vmatpush1.bf16.msra.mxu0 %v1887
    %2762 = vmatprep.subr.bf16.mxu0 %v1884
    %2763 = vmatpush1.bf16.msra.mxu0 %v1883
    %2764 = vmatprep.subr.bf16.mxu0 %v1880
    %2765 = vmatpush1.bf16.msra.mxu0 %v1879
    %2766 = vmatprep.subr.bf16.mxu0 %v1876
    %2767 = vmatpush1.bf16.msra.mxu0 %v1875
    %2768 = vmatprep.subr.bf16.mxu0 %v1872
    %2769 = vmatpush1.bf16.msra.mxu0 %v1871
    %2770 = vmatprep.subr.bf16.mxu0 %v1868
    %2771 = vmatpush1.bf16.msra.mxu0 %v1867
    %2772 = vmatprep.subr.bf16.mxu0 %v1928
    %2773 = vmatpush2.bf16.msra.mxu0 %v1927
    %2774 = vmatprep.subr.bf16.mxu0 %v1924
    %2775 = vmatpush2.bf16.msra.mxu0 %v1923
    %2776 = vmatprep.subr.bf16.mxu0 %v1920
    %2777 = vmatpush2.bf16.msra.mxu0 %v1919
    %2778 = vmatprep.subr.bf16.mxu0 %v1916
    %2779 = vmatpush2.bf16.msra.mxu0 %v1915
    %2780 = vmatprep.subr.bf16.mxu0 %v1912
    %2781 = vmatpush2.bf16.msra.mxu0 %v1911
    %2782 = vmatprep.subr.bf16.mxu0 %v1908
    %2783 = vmatpush2.bf16.msra.mxu0 %v1907
    %2784 = vmatprep.subr.bf16.mxu0 %v1904
    %2785 = vmatpush2.bf16.msra.mxu0 %v1903
    %2786 = vmatprep.subr.bf16.mxu0 %v1900
    %2787 = vmatpush2.bf16.msra.mxu0 %v1899
    %2788 = vmatprep.mubr.bf16.mxu0 %v547
    %2789 = vmatmul.mubr.bf16.gmra.mxu0 %v546
    %v2790 = vpop.f32.mrf.mxu0
    %v2791 = vadd.f32 %v2748, %v2790
    %v2792 = vpop.f32.mrf.mxu0
    %v2793 = vadd.f32 %v2750, %v2792
    %v2794 = vpop.f32.mrf.mxu0
    %v2795 = vadd.f32 %v2752, %v2794
    %v2796 = vpop.f32.mrf.mxu0
    %v2797 = vadd.f32 %v2754, %v2796
    %2798 = vdwg.mxu0
    %2799 = vmatprep.subr.bf16.mxu0 %v2324
    %2800 = vmatpush1.bf16.msra.mxu0 %v2321
    %2801 = vmatprep.subr.bf16.mxu0 %v1956
    %2802 = vmatpush1.bf16.msra.mxu0 %v1955
    %2803 = vmatprep.subr.bf16.mxu0 %v1952
    %2804 = vmatpush1.bf16.msra.mxu0 %v1951
    %2805 = vmatprep.subr.bf16.mxu0 %v1948
    %2806 = vmatpush1.bf16.msra.mxu0 %v1947
    %2807 = vmatprep.subr.bf16.mxu0 %v1944
    %2808 = vmatpush1.bf16.msra.mxu0 %v1943
    %2809 = vmatprep.subr.bf16.mxu0 %v1940
    %2810 = vmatpush1.bf16.msra.mxu0 %v1939
    %2811 = vmatprep.subr.bf16.mxu0 %v1936
    %2812 = vmatpush1.bf16.msra.mxu0 %v1935
    %2813 = vmatprep.subr.bf16.mxu0 %v1932
    %2814 = vmatpush1.bf16.msra.mxu0 %v1931
    %2815 = vmatprep.subr.bf16.mxu0 0
    %2816 = vmatpush2.bf16.msra.mxu0 0
    %2817 = vmatprep.subr.bf16.mxu0 0
    %2818 = vmatpush2.bf16.msra.mxu0 0
    %2819 = vmatprep.subr.bf16.mxu0 0
    %2820 = vmatpush2.bf16.msra.mxu0 0
    %2821 = vmatprep.subr.bf16.mxu0 0
    %2822 = vmatpush2.bf16.msra.mxu0 0
    %2823 = vmatprep.subr.bf16.mxu0 0
    %2824 = vmatpush2.bf16.msra.mxu0 0
    %2825 = vmatprep.subr.bf16.mxu0 0
    %2826 = vmatpush2.bf16.msra.mxu0 0
    %2827 = vmatprep.subr.bf16.mxu0 0
    %2828 = vmatpush2.bf16.msra.mxu0 0
    %2829 = vmatprep.subr.bf16.mxu0 0
    %2830 = vmatpush2.bf16.msra.mxu0 0
    %2831 = vmatprep.mubr.bf16.mxu0 0
    %2832 = vmatmul.mubr.bf16.gmra.mxu0 %v2311
    %v2833 = vpop.f32.mrf.mxu0
    %v2834 = vadd.f32 %v2791, %v2833
    %v2835 = vpop.f32.mrf.mxu0
    %v2836 = vadd.f32 %v2793, %v2835
    %v2837 = vpop.f32.mrf.mxu0
    %v2838 = vadd.f32 %v2795, %v2837
    %v2839 = vpop.f32.mrf.mxu0
    %v2840 = vadd.f32 %v2797, %v2839
    %2841 = vdwg.mxu0
    %v2842 = vmax.f32 %v2576, 0.0
    %v2843 = vmax.f32 %v2578, 0.0
    %v2844 = vmax.f32 %v2834, 0.0
    %v2845 = vmax.f32 %v2836, 0.0
    %v2846 = vmax.f32 %v2580, 0.0
    %v2847 = vmax.f32 %v2582, 0.0
    %v2848 = vmax.f32 %v2838, 0.0
    %v2849 = vmax.f32 %v2840, 0.0
    %v2850 = vpack.c.bf16 %v2846, %v2842
    %v2851 = vpack.c.bf16 %v2847, %v2843
    %v2852 = vpack.c.bf16 %v2848, %v2844
    %v2853 = vpack.c.bf16 %v2849, %v2845
    %v2854 = vld [vmem:[#allocation6] sm:$0xf]
    %v2855 = vld [vmem:[#allocation6 + $0x4] sm:$0xf]
    %v2856 = vld [vmem:[#allocation6 + $0x8] sm:$0xf]
    %v2857 = vld [vmem:[#allocation6 + $0xc] sm:$0xf]
    %v2858 = vld [vmem:[#allocation6 + $0x10] sm:$0xf]
    %v2859 = vld [vmem:[#allocation6 + $0x14] sm:$0xf]
    %v2860 = vld [vmem:[#allocation6 + $0x18] sm:$0xf]
    %v2861 = vld [vmem:[#allocation6 + $0x1c] sm:$0xf]
    %v2862 = vld [vmem:[#allocation6 + $0x20] sm:$0xf]
    %v2863 = vld [vmem:[#allocation6 + $0x24] sm:$0xf]
    %v2864 = vld [vmem:[#allocation6 + $0x28] sm:$0xf]
    %v2865 = vld [vmem:[#allocation6 + $0x2c] sm:$0xf]
    %v2866 = vld [vmem:[#allocation6 + $0x30] sm:$0xf]
    %v2867 = vld [vmem:[#allocation6 + $0x34] sm:$0xf]
    %v2868 = vld [vmem:[#allocation6 + $0x38] sm:$0xf]
    %v2869 = vld [vmem:[#allocation6 + $0x3c] sm:$0xf]
    %v2870 = vld [vmem:[#allocation6 + $0x40] sm:$0xf]
    %v2871 = vld [vmem:[#allocation6 + $0x44] sm:$0xf]
    %v2872 = vld [vmem:[#allocation6 + $0x48] sm:$0xf]
    %v2873 = vld [vmem:[#allocation6 + $0x4c] sm:$0xf]
    %v2874 = vld [vmem:[#allocation6 + $0x50] sm:$0xf]
    %v2875 = vld [vmem:[#allocation6 + $0x54] sm:$0xf]
    %v2876 = vld [vmem:[#allocation6 + $0x58] sm:$0xf]
    %v2877 = vld [vmem:[#allocation6 + $0x5c] sm:$0xf]
    %v2878 = vld [vmem:[#allocation6 + $0x60] sm:$0xf]
    %v2879 = vld [vmem:[#allocation6 + $0x64] sm:$0xf]
    %v2880 = vld [vmem:[#allocation6 + $0x68] sm:$0xf]
    %v2881 = vld [vmem:[#allocation6 + $0x6c] sm:$0xf]
    %v2882 = vld [vmem:[#allocation6 + $0x70] sm:$0xf]
    %v2883 = vld [vmem:[#allocation6 + $0x74] sm:$0xf]
    %v2884 = vld [vmem:[#allocation6 + $0x78] sm:$0xf]
    %v2885 = vld [vmem:[#allocation6 + $0x7c] sm:$0xf]
    %v2886 = vld [vmem:[#allocation6 + $0x80] sm:$0xf]
    %v2887 = vld [vmem:[#allocation6 + $0x84] sm:$0xf]
    %v2888 = vld [vmem:[#allocation6 + $0x88] sm:$0xf]
    %v2889 = vld [vmem:[#allocation6 + $0x8c] sm:$0xf]
    %v2890 = vld [vmem:[#allocation6 + $0x90] sm:$0xf]
    %v2891 = vld [vmem:[#allocation6 + $0x94] sm:$0xf]
    %v2892 = vld [vmem:[#allocation6 + $0x98] sm:$0xf]
    %v2893 = vld [vmem:[#allocation6 + $0x9c] sm:$0xf]
    %v2894 = vld [vmem:[#allocation6 + $0xa0] sm:$0xf]
    %v2895 = vld [vmem:[#allocation6 + $0xa4] sm:$0xf]
    %v2896 = vld [vmem:[#allocation6 + $0xa8] sm:$0xf]
    %v2897 = vld [vmem:[#allocation6 + $0xac] sm:$0xf]
    %v2898 = vld [vmem:[#allocation6 + $0xb0] sm:$0xf]
    %v2899 = vld [vmem:[#allocation6 + $0xb4] sm:$0xf]
    %v2900 = vld [vmem:[#allocation6 + $0xb8] sm:$0xf]
    %v2901 = vld [vmem:[#allocation6 + $0xbc] sm:$0xf]
    %v2902 = vld [vmem:[#allocation6 + $0xc0] sm:$0xf]
    %v2903 = vld [vmem:[#allocation6 + $0xc4] sm:$0xf]
    %v2904 = vld [vmem:[#allocation6 + $0xc8] sm:$0xf]
    %v2905 = vld [vmem:[#allocation6 + $0xcc] sm:$0xf]
    %v2906 = vld [vmem:[#allocation6 + $0xd0] sm:$0xf]
    %v2907 = vld [vmem:[#allocation6 + $0xd4] sm:$0xf]
    %v2908 = vld [vmem:[#allocation6 + $0xd8] sm:$0xf]
    %v2909 = vld [vmem:[#allocation6 + $0xdc] sm:$0xf]
    %v2910 = vld [vmem:[#allocation6 + $0xe0] sm:$0xf]
    %v2911 = vld [vmem:[#allocation6 + $0xe4] sm:$0xf]
    %v2912 = vld [vmem:[#allocation6 + $0xe8] sm:$0xf]
    %v2913 = vld [vmem:[#allocation6 + $0xec] sm:$0xf]
    %v2914 = vld [vmem:[#allocation6 + $0xf0] sm:$0xf]
    %v2915 = vld [vmem:[#allocation6 + $0xf4] sm:$0xf]
    %v2916 = vld [vmem:[#allocation6 + $0xf8] sm:$0xf]
    %v2917 = vld [vmem:[#allocation6 + $0xfc] sm:$0xf]
    %v2918 = vld [vmem:[#allocation7] sm:$0x1]
    %v2920 = vlaneseq
    %v2921 = vshrl.u32 %v2920, 7
    %v2922 = vsub.s32 0, %v2921
    %v2923 = vrot.slane %v2918, %v2922
    %v2989 = vunpack.c.l.b16 %v2854
    %v2990 = vunpack.c.l.b16 %v2855
    %v2991 = vunpack.c.l.b16 %v2856
    %v2992 = vunpack.c.l.b16 %v2857
    %v2993 = vunpack.c.l.b16 %v2858
    %v2994 = vunpack.c.l.b16 %v2859
    %v2995 = vunpack.c.l.b16 %v2860
    %v2996 = vunpack.c.l.b16 %v2861
    %v2997 = vunpack.c.l.b16 %v2862
    %v2998 = vunpack.c.l.b16 %v2863
    %v2999 = vunpack.c.l.b16 %v2864
    %v3000 = vunpack.c.l.b16 %v2865
    %v3001 = vunpack.c.l.b16 %v2866
    %v3002 = vunpack.c.l.b16 %v2867
    %v3003 = vunpack.c.l.b16 %v2868
    %v3004 = vunpack.c.l.b16 %v2869
    %v3005 = vunpack.c.l.b16 %v2870
    %v3006 = vunpack.c.l.b16 %v2871
    %v3007 = vunpack.c.l.b16 %v2872
    %v3008 = vunpack.c.l.b16 %v2873
    %v3009 = vunpack.c.l.b16 %v2874
    %v3010 = vunpack.c.l.b16 %v2875
    %v3011 = vunpack.c.l.b16 %v2876
    %v3012 = vunpack.c.l.b16 %v2877
    %v3013 = vunpack.c.l.b16 %v2878
    %v3014 = vunpack.c.l.b16 %v2879
    %v3015 = vunpack.c.l.b16 %v2880
    %v3016 = vunpack.c.l.b16 %v2881
    %v3017 = vunpack.c.l.b16 %v2882
    %v3018 = vunpack.c.l.b16 %v2883
    %v3019 = vunpack.c.l.b16 %v2884
    %v3020 = vunpack.c.l.b16 %v2885
    %v3021 = vunpack.c.l.b16 %v2886
    %v3022 = vunpack.c.l.b16 %v2887
    %v3023 = vunpack.c.l.b16 %v2888
    %v3024 = vunpack.c.l.b16 %v2889
    %v3025 = vunpack.c.l.b16 %v2890
    %v3026 = vunpack.c.l.b16 %v2891
    %v3027 = vunpack.c.l.b16 %v2892
    %v3028 = vunpack.c.l.b16 %v2893
    %v3029 = vunpack.c.l.b16 %v2894
    %v3030 = vunpack.c.l.b16 %v2895
    %v3031 = vunpack.c.l.b16 %v2896
    %v3032 = vunpack.c.l.b16 %v2897
    %v3033 = vunpack.c.l.b16 %v2898
    %v3034 = vunpack.c.l.b16 %v2899
    %v3035 = vunpack.c.l.b16 %v2900
    %v3036 = vunpack.c.l.b16 %v2901
    %v3037 = vunpack.c.l.b16 %v2902
    %v3038 = vunpack.c.l.b16 %v2903
    %v3039 = vunpack.c.l.b16 %v2904
    %v3040 = vunpack.c.l.b16 %v2905
    %v3041 = vunpack.c.l.b16 %v2906
    %v3042 = vunpack.c.l.b16 %v2907
    %v3043 = vunpack.c.l.b16 %v2908
    %v3044 = vunpack.c.l.b16 %v2909
    %v3045 = vunpack.c.l.b16 %v2910
    %v3046 = vunpack.c.l.b16 %v2911
    %v3047 = vunpack.c.l.b16 %v2912
    %v3048 = vunpack.c.l.b16 %v2913
    %v3049 = vunpack.c.l.b16 %v2914
    %v3050 = vunpack.c.l.b16 %v2915
    %v3051 = vunpack.c.l.b16 %v2916
    %v3052 = vunpack.c.l.b16 %v2917
    %v3053 = vpack.c.b16 %v2990, %v2989
    %v3054 = vpack.c.b16 %v2992, %v2991
    %v3055 = vpack.c.b16 %v2994, %v2993
    %v3056 = vpack.c.b16 %v2996, %v2995
    %v3057 = vpack.c.b16 %v2998, %v2997
    %v3058 = vpack.c.b16 %v3000, %v2999
    %v3059 = vpack.c.b16 %v3002, %v3001
    %v3060 = vpack.c.b16 %v3004, %v3003
    %v3061 = vpack.c.b16 %v3006, %v3005
    %v3062 = vpack.c.b16 %v3008, %v3007
    %v3063 = vpack.c.b16 %v3010, %v3009
    %v3064 = vpack.c.b16 %v3012, %v3011
    %v3065 = vpack.c.b16 %v3014, %v3013
    %v3066 = vpack.c.b16 %v3016, %v3015
    %v3067 = vpack.c.b16 %v3018, %v3017
    %v3068 = vpack.c.b16 %v3020, %v3019
    %v3069 = vpack.c.b16 %v3022, %v3021
    %v3070 = vpack.c.b16 %v3024, %v3023
    %v3071 = vpack.c.b16 %v3026, %v3025
    %v3072 = vpack.c.b16 %v3028, %v3027
    %v3073 = vpack.c.b16 %v3030, %v3029
    %v3074 = vpack.c.b16 %v3032, %v3031
    %v3075 = vpack.c.b16 %v3034, %v3033
    %v3076 = vpack.c.b16 %v3036, %v3035
    %v3077 = vpack.c.b16 %v3038, %v3037
    %v3078 = vpack.c.b16 %v3040, %v3039
    %v3079 = vpack.c.b16 %v3042, %v3041
    %v3080 = vpack.c.b16 %v3044, %v3043
    %v3081 = vpack.c.b16 %v3046, %v3045
    %v3082 = vpack.c.b16 %v3048, %v3047
    %v3083 = vpack.c.b16 %v3050, %v3049
    %v3084 = vpack.c.b16 %v3052, %v3051
    %3117 = vmatprep.subr.bf16.mxu0 0
    %3118 = vmatpush1.bf16.msra.mxu0 %v3060
    %3119 = vmatprep.subr.bf16.mxu0 0
    %3120 = vmatpush1.bf16.msra.mxu0 %v3059
    %3121 = vmatprep.subr.bf16.mxu0 0
    %3122 = vmatpush1.bf16.msra.mxu0 %v3058
    %3123 = vmatprep.subr.bf16.mxu0 0
    %3124 = vmatpush1.bf16.msra.mxu0 %v3057
    %3125 = vmatprep.subr.bf16.mxu0 0
    %3126 = vmatpush1.bf16.msra.mxu0 %v3056
    %3127 = vmatprep.subr.bf16.mxu0 0
    %3128 = vmatpush1.bf16.msra.mxu0 %v3055
    %3129 = vmatprep.subr.bf16.mxu0 0
    %3130 = vmatpush1.bf16.msra.mxu0 %v3054
    %3131 = vmatprep.subr.bf16.mxu0 0
    %3132 = vmatpush1.bf16.msra.mxu0 %v3053
    %3133 = vmatprep.subr.bf16.mxu0 0
    %3134 = vmatpush2.bf16.msra.mxu0 %v3068
    %3135 = vmatprep.subr.bf16.mxu0 0
    %3136 = vmatpush2.bf16.msra.mxu0 %v3067
    %3137 = vmatprep.subr.bf16.mxu0 0
    %3138 = vmatpush2.bf16.msra.mxu0 %v3066
    %3139 = vmatprep.subr.bf16.mxu0 0
    %3140 = vmatpush2.bf16.msra.mxu0 %v3065
    %3141 = vmatprep.subr.bf16.mxu0 0
    %3142 = vmatpush2.bf16.msra.mxu0 %v3064
    %3143 = vmatprep.subr.bf16.mxu0 0
    %3144 = vmatpush2.bf16.msra.mxu0 %v3063
    %3145 = vmatprep.subr.bf16.mxu0 0
    %3146 = vmatpush2.bf16.msra.mxu0 %v3062
    %3147 = vmatprep.subr.bf16.mxu0 0
    %3148 = vmatpush2.bf16.msra.mxu0 %v3061
    %3149 = vmatprep.mubr.bf16.mxu0 %v2851
    %3150 = vmatmul.mubr.bf16.gmra.mxu0 %v2850
    %v3151 = vpop.f32.mrf.mxu0
    %v3152 = vadd.f32 %v2923, %v3151
    %v3153 = vpop.f32.mrf.mxu0
    %v3154 = vpop.f32.mrf.mxu0
    %v3155 = vadd.f32 %v2923, %v3154
    %v3156 = vpop.f32.mrf.mxu0
    %3157 = vdwg.mxu0
    %3158 = vmatprep.subr.bf16.mxu0 0
    %3159 = vmatpush1.bf16.msra.mxu0 %v3076
    %3160 = vmatprep.subr.bf16.mxu0 0
    %3161 = vmatpush1.bf16.msra.mxu0 %v3075
    %3162 = vmatprep.subr.bf16.mxu0 0
    %3163 = vmatpush1.bf16.msra.mxu0 %v3074
    %3164 = vmatprep.subr.bf16.mxu0 0
    %3165 = vmatpush1.bf16.msra.mxu0 %v3073
    %3166 = vmatprep.subr.bf16.mxu0 0
    %3167 = vmatpush1.bf16.msra.mxu0 %v3072
    %3168 = vmatprep.subr.bf16.mxu0 0
    %3169 = vmatpush1.bf16.msra.mxu0 %v3071
    %3170 = vmatprep.subr.bf16.mxu0 0
    %3171 = vmatpush1.bf16.msra.mxu0 %v3070
    %3172 = vmatprep.subr.bf16.mxu0 0
    %3173 = vmatpush1.bf16.msra.mxu0 %v3069
    %3174 = vmatprep.subr.bf16.mxu0 0
    %3175 = vmatpush2.bf16.msra.mxu0 %v3084
    %3176 = vmatprep.subr.bf16.mxu0 0
    %3177 = vmatpush2.bf16.msra.mxu0 %v3083
    %3178 = vmatprep.subr.bf16.mxu0 0
    %3179 = vmatpush2.bf16.msra.mxu0 %v3082
    %3180 = vmatprep.subr.bf16.mxu0 0
    %3181 = vmatpush2.bf16.msra.mxu0 %v3081
    %3182 = vmatprep.subr.bf16.mxu0 0
    %3183 = vmatpush2.bf16.msra.mxu0 %v3080
    %3184 = vmatprep.subr.bf16.mxu0 0
    %3185 = vmatpush2.bf16.msra.mxu0 %v3079
    %3186 = vmatprep.subr.bf16.mxu0 0
    %3187 = vmatpush2.bf16.msra.mxu0 %v3078
    %3188 = vmatprep.subr.bf16.mxu0 0
    %3189 = vmatpush2.bf16.msra.mxu0 %v3077
    %3190 = vmatprep.mubr.bf16.mxu0 %v2853
    %3191 = vmatmul.mubr.bf16.gmra.mxu0 %v2852
    %v3192 = vpop.f32.mrf.mxu0
    %v3193 = vadd.f32 %v3152, %v3192
    %v3194 = vpop.f32.mrf.mxu0
    %v3195 = vpop.f32.mrf.mxu0
    %v3196 = vadd.f32 %v3155, %v3195
    %v3197 = vpop.f32.mrf.mxu0
    %3198 = vdwg.mxu0
    %v3199 = vmax.f32 %v3193, 0.0
    %v3200 = vmax.f32 %v3196, 0.0
    %v3201 = vpack.c.bf16 %v3200, %v3199
    %v3202 = vld [vmem:[%s5] sm:$0xf]
    %v3203 = vld [vmem:[%s5 + $0x4] sm:$0xf]
    %v3204 = vld [vmem:[%s5 + $0x8] sm:$0xf]
    %v3205 = vld [vmem:[%s5 + $0xc] sm:$0xf]
    %v3206 = vld [vmem:[%s5 + $0x10] sm:$0xf]
    %v3207 = vld [vmem:[%s5 + $0x14] sm:$0xf]
    %v3208 = vld [vmem:[%s5 + $0x18] sm:$0xf]
    %v3209 = vld [vmem:[%s5 + $0x1c] sm:$0xf]
    %v3210 = vld [vmem:[%s5 + $0x20] sm:$0xf]
    %v3211 = vld [vmem:[%s5 + $0x24] sm:$0xf]
    %v3212 = vld [vmem:[%s5 + $0x28] sm:$0xf]
    %v3213 = vld [vmem:[%s5 + $0x2c] sm:$0xf]
    %v3214 = vld [vmem:[%s5 + $0x30] sm:$0xf]
    %v3215 = vld [vmem:[%s5 + $0x34] sm:$0xf]
    %v3216 = vld [vmem:[%s5 + $0x38] sm:$0xf]
    %v3217 = vld [vmem:[%s5 + $0x3c] sm:$0xf]
    %v3218 = vld [vmem:[#allocation9] sm:$0x1]
    %v3220 = vlaneseq
    %v3221 = vshrl.u32 %v3220, 7
    %v3222 = vsub.s32 0, %v3221
    %v3223 = vrot.slane %v3218, %v3222
    %v3241 = vunpack.c.l.b16 %v3202
    %v3242 = vunpack.c.l.b16 %v3203
    %v3243 = vunpack.c.l.b16 %v3204
    %v3244 = vunpack.c.l.b16 %v3205
    %v3245 = vunpack.c.l.b16 %v3206
    %v3246 = vunpack.c.l.b16 %v3207
    %v3247 = vunpack.c.l.b16 %v3208
    %v3248 = vunpack.c.l.b16 %v3209
    %v3249 = vunpack.c.l.b16 %v3210
    %v3250 = vunpack.c.l.b16 %v3211
    %v3251 = vunpack.c.l.b16 %v3212
    %v3252 = vunpack.c.l.b16 %v3213
    %v3253 = vunpack.c.l.b16 %v3214
    %v3254 = vunpack.c.l.b16 %v3215
    %v3255 = vunpack.c.l.b16 %v3216
    %v3256 = vunpack.c.l.b16 %v3217
    %v3257 = vpack.c.b16 %v3242, %v3241
    %v3258 = vpack.c.b16 %v3244, %v3243
    %v3259 = vpack.c.b16 %v3246, %v3245
    %v3260 = vpack.c.b16 %v3248, %v3247
    %v3261 = vpack.c.b16 %v3250, %v3249
    %v3262 = vpack.c.b16 %v3252, %v3251
    %v3263 = vpack.c.b16 %v3254, %v3253
    %v3264 = vpack.c.b16 %v3256, %v3255
    %3273 = vmatprep.subr.bf16.mxu0 0
    %3274 = vmatpush1.bf16.msra.mxu0 %v3264
    %3275 = vmatprep.subr.bf16.mxu0 0
    %3276 = vmatpush1.bf16.msra.mxu0 %v3263
    %3277 = vmatprep.subr.bf16.mxu0 0
    %3278 = vmatpush1.bf16.msra.mxu0 %v3262
    %3279 = vmatprep.subr.bf16.mxu0 0
    %3280 = vmatpush1.bf16.msra.mxu0 %v3261
    %3281 = vmatprep.subr.bf16.mxu0 0
    %3282 = vmatpush1.bf16.msra.mxu0 %v3260
    %3283 = vmatprep.subr.bf16.mxu0 0
    %3284 = vmatpush1.bf16.msra.mxu0 %v3259
    %3285 = vmatprep.subr.bf16.mxu0 0
    %3286 = vmatpush1.bf16.msra.mxu0 %v3258
    %3287 = vmatprep.subr.bf16.mxu0 0
    %3288 = vmatpush1.bf16.msra.mxu0 %v3257
    %3289 = vmatprep.subr.bf16.mxu0 0
    %3290 = vmatpush2.bf16.msra.mxu0 0
    %3291 = vmatprep.subr.bf16.mxu0 0
    %3292 = vmatpush2.bf16.msra.mxu0 0
    %3293 = vmatprep.subr.bf16.mxu0 0
    %3294 = vmatpush2.bf16.msra.mxu0 0
    %3295 = vmatprep.subr.bf16.mxu0 0
    %3296 = vmatpush2.bf16.msra.mxu0 0
    %3297 = vmatprep.subr.bf16.mxu0 0
    %3298 = vmatpush2.bf16.msra.mxu0 0
    %3299 = vmatprep.subr.bf16.mxu0 0
    %3300 = vmatpush2.bf16.msra.mxu0 0
    %3301 = vmatprep.subr.bf16.mxu0 0
    %3302 = vmatpush2.bf16.msra.mxu0 0
    %3303 = vmatprep.subr.bf16.mxu0 0
    %3304 = vmatpush2.bf16.msra.mxu0 0
    %3305 = vmatprep.mubr.bf16.mxu0 0
    %3306 = vmatmul.mubr.bf16.gmra.mxu0 %v3201
    %v3307 = vpop.f32.mrf.mxu0
    %v3308 = vadd.f32 %v3223, %v3307
    %v3309 = vpop.f32.mrf.mxu0
    %v3310 = vpop.f32.mrf.mxu0
    %v3311 = vadd.f32 %v3223, %v3310
    %v3312 = vpop.f32.mrf.mxu0
    %3313 = vdwg.mxu0
    %v3314 = vmax.f32 %v3308, 0.0
    %v3315 = vmax.f32 %v3311, 0.0
    %v3316 = vpack.c.bf16 %v3315, %v3314
    %v3317 = vld [vmem:[#allocation10] sm:$0xf]
    %v3318 = vld [vmem:[#allocation10 + $0x4] sm:$0xf]
    %v3319 = vld [vmem:[#allocation10 + $0x8] sm:$0xf]
    %v3320 = vld [vmem:[#allocation10 + $0xc] sm:$0xf]
    %v3321 = vld [vmem:[#allocation12] sm:$0x1]
    %v3323 = vlaneseq
    %v3324 = vshrl.u32 %v3323, 7
    %v3325 = vsub.s32 0, %v3324
    %v3326 = vrot.slane %v3321, %v3325
    %v3332 = vunpack.c.l.b16 %v3317
    %v3333 = vunpack.c.l.b16 %v3318
    %v3334 = vunpack.c.l.b16 %v3319
    %v3335 = vunpack.c.l.b16 %v3320
    %v3336 = vpack.c.b16 %v3333, %v3332
    %v3337 = vpack.c.b16 %v3335, %v3334
    %vm3340 = vcmask 261120
    %v3342 = vsel %vm3340, %v3316, 0
    %3344 = vmatprep.subr.bf16.mxu0 0
    %3345 = vmatpush1.bf16.msra.mxu0 0
    %3346 = vmatprep.subr.bf16.mxu0 0
    %3347 = vmatpush1.bf16.msra.mxu0 0
    %3348 = vmatprep.subr.bf16.mxu0 0
    %3349 = vmatpush1.bf16.msra.mxu0 0
    %3350 = vmatprep.subr.bf16.mxu0 0
    %3351 = vmatpush1.bf16.msra.mxu0 0
    %3352 = vmatprep.subr.bf16.mxu0 0
    %3353 = vmatpush1.bf16.msra.mxu0 0
    %3354 = vmatprep.subr.bf16.mxu0 0
    %3355 = vmatpush1.bf16.msra.mxu0 0
    %3356 = vmatprep.subr.bf16.mxu0 0
    %3357 = vmatpush1.bf16.msra.mxu0 %v3337
    %3358 = vmatprep.subr.bf16.mxu0 0
    %3359 = vmatpush1.bf16.msra.mxu0 %v3336
    %3360 = vmatprep.subr.bf16.mxu0 0
    %3361 = vmatpush2.bf16.msra.mxu0 0
    %3362 = vmatprep.subr.bf16.mxu0 0
    %3363 = vmatpush2.bf16.msra.mxu0 0
    %3364 = vmatprep.subr.bf16.mxu0 0
    %3365 = vmatpush2.bf16.msra.mxu0 0
    %3366 = vmatprep.subr.bf16.mxu0 0
    %3367 = vmatpush2.bf16.msra.mxu0 0
    %3368 = vmatprep.subr.bf16.mxu0 0
    %3369 = vmatpush2.bf16.msra.mxu0 0
    %3370 = vmatprep.subr.bf16.mxu0 0
    %3371 = vmatpush2.bf16.msra.mxu0 0
    %3372 = vmatprep.subr.bf16.mxu0 0
    %3373 = vmatpush2.bf16.msra.mxu0 0
    %3374 = vmatprep.subr.bf16.mxu0 0
    %3375 = vmatpush2.bf16.msra.mxu0 0
    %3376 = vmatprep.mubr.bf16.mxu0 0
    %3377 = vmatmul.mubr.bf16.gmra.mxu0 %v3342
    %v3378 = vpop.f32.mrf.mxu0
    %v3379 = vadd.f32 %v3326, %v3378
    %v3380 = vpop.f32.mrf.mxu0
    %v3381 = vpop.f32.mrf.mxu0
    %v3382 = vadd.f32 %v3326, %v3381
    %v3383 = vpop.f32.mrf.mxu0
    %3384 = vdwg.mxu0
    %v3385 = vpack.c.bf16 %v3382, %v3379
    %v3387 = vunpack.c.l.b16 %v3385
    %v3388 = vunpack.c.h.b16 %v3385
    %v3389 = vpack.c.b16 %v3387, %v3387
    %v3390 = vpack.c.b16 %v3388, %v3388
    %3393 = vst [vmem:[%s9] sm:$0xf] %v3389
    %3394 = vst [vmem:[%s9 + $0x4] sm:$0xf] %v3390
    // Predicated region
    $region66: #{mlp_forward.1} parent=1 // pred_check
      _
    $region67: #{mlp_forward.1} parent=1 // pred_check_branch
      %3396 = sbr.rel (0) target = $region69
    $region68: #{mlp_forward.1} parent=1 // pred_region
      _
    $region69: #{mlp_forward.1} parent=1 // pred_fallthru
      _
    // Predicated region
    $region70: #{mlp_forward.1} parent=1 // pred_check
      _
    $region71: #{mlp_forward.1} parent=1 // pred_check_branch
      %3398 = sbr.rel (0) target = $region73
    $region72: #{mlp_forward.1} parent=1 // pred_region
      _
    $region73: #{mlp_forward.1} parent=1 // pred_fallthru
      _
    %3399 = vsyncpa [#allocation3], 1
    %3400 = vsyncpa [#allocation5], 1
    %3401 = vsyncpa [#allocation8], 1
    %3402 = vsyncpa [#allocation11], 1

</llo_original>
